<compile_context>
chip_gen: v7x
topology: tpu7x:2x2x1
jax: 0.10.0
libtpu: 0.0.40
codegen_flags: <defaults>
</compile_context>

<pallas_src>
import functools

import jax
import jax.numpy as jnp
from jax import lax
from jax.experimental import pallas as pl
from jax.experimental.pallas import tpu as pltpu


@functools.lru_cache(maxsize=None)
def _roll_mode(h: int, w: int) -> str:
    """Probe pltpu.roll on an (h, w) array — the exact shape the kernel rolls.

    Returns:
      "roll_nm1": pltpu.roll(v, n-1, axis) gives out[i] = v[i+1]  (np.roll conv.)
      "roll_1"  : pltpu.roll(v, 1,   axis) gives out[i] = v[i+1]  (reversed conv.)
      "slice"   : roll unusable/incorrect on this shape -> slice-based taps.
    """
    try:
        def probe(x_ref, r_nm1_ref, r_1_ref, c_nm1_ref, c_1_ref):
            x = x_ref[...]
            r_nm1_ref[...] = pltpu.roll(x, h - 1, 0)
            r_1_ref[...] = pltpu.roll(x, 1, 0)
            c_nm1_ref[...] = pltpu.roll(x, w - 1, 1)
            c_1_ref[...] = pltpu.roll(x, 1, 1)

        x = (lax.broadcasted_iota(jnp.float32, (h, w), 0) * w
             + lax.broadcasted_iota(jnp.float32, (h, w), 1))
        shape = jax.ShapeDtypeStruct((h, w), jnp.float32)
        r_nm1, r_1, c_nm1, c_1 = pl.pallas_call(
            probe, out_shape=(shape, shape, shape, shape))(x)

        want_row = jnp.roll(x, -1, axis=0)   # out[i, :] = x[i+1, :]
        want_col = jnp.roll(x, -1, axis=1)   # out[:, j] = x[:, j+1]
        if bool(jnp.array_equal(r_nm1, want_row)) and bool(
                jnp.array_equal(c_nm1, want_col)):
            return "roll_nm1"
        if bool(jnp.array_equal(r_1, want_row)) and bool(
                jnp.array_equal(c_1, want_col)):
            return "roll_1"
    except Exception:
        pass
    return "slice"


def _grid_steps(batch: int) -> int:
    """2 parallel grid steps on dual-TC v7x (one per core); 1 step on v5e/v6e."""
    try:
        kind = jax.devices()[0].device_kind.lower()
    except Exception:
        kind = ""
    dual_tc = ("v7" in kind) or ("tpu7" in kind) or ("7x" in kind)
    return 2 if (dual_tc and batch % 2 == 0) else 1


def _make_kernel(shift_mode: str):
    """Fused (conv2x2 with folded 1x1 conv) + bias + tanh kernel body, NCHW."""

    def kernel(x_ref, w_ref, b_ref, o_ref):
        # x_ref : (BB, Cin, H, W)   VMEM  input block (BB batch elements)
        # w_ref : (4*Cin*C2,)       SMEM  folded weights, [tap, cin, c2] order
        # b_ref : (C2,)             SMEM  folded bias
        # o_ref : (BB, C2, Ho, Wo)  VMEM  Ho = H-1, Wo = W-1 (valid conv)
        BB, Cin, H, W = x_ref.shape
        C2, Ho, Wo = o_ref.shape[1], o_ref.shape[2], o_ref.shape[3]

        # Hoist every SMEM scalar read out of the batch loop (loop-invariant).
        wgt = [[[w_ref[(t * Cin + ci) * C2 + c2] for c2 in range(C2)]
                for ci in range(Cin)] for t in range(4)]
        bias = [b_ref[c2] for c2 in range(C2)]

        def shift1(v, axis):
            # out[..., i, ...] = v[..., i+1, ...]; wrap garbage only in the
            # last row/col, which the [:Ho, :Wo] view drops.
            n = v.shape[axis]
            if shift_mode == "roll_nm1":
                return pltpu.roll(v, n - 1, axis)
            return pltpu.roll(v, 1, axis)

        def taps(x_c):
            # Patches for taps (kh, kw) = (0,0), (0,1), (1,0), (1,1), each as
            # an (Ho, Wo) view.
            if shift_mode in ("roll_nm1", "roll_1"):
                x_d = shift1(x_c, 0)                       # rows shifted up (XLU)
                full = (x_c, shift1(x_c, 1), x_d, shift1(x_d, 1))
                return tuple(p[:Ho, :Wo] for p in full)    # origin slices: cheap
            # Fallback: unaligned value slices (validated, slower).
            return tuple(x_c[kh:kh + Ho, kw:kw + Wo]
                         for kh in (0, 1) for kw in (0, 1))

        def batch_body(b, carry):
            # One f32 accumulator per output channel; (Ho, Wo) on vregs.
            accs = [jnp.zeros((Ho, Wo), jnp.float32) for _ in range(C2)]
            for ci in range(Cin):
                patches = taps(x_ref[b, ci])               # (H, W) load
                for t in range(4):
                    p = patches[t]
                    for c2 in range(C2):
                        # scalar (hoisted SMEM read) * vector FMA on the VPU.
                        accs[c2] = accs[c2] + p * wgt[t][ci][c2]
            for c2 in range(C2):
                # tanh on the EUP; store keeps Wo on lanes.
                o_ref[b, c2] = jnp.tanh(accs[c2] + bias[c2])
            return carry

        # fori_loop (not an unrolled Python loop) bounds per-batch live ranges.
        lax.fori_loop(0, BB, batch_body, 0)

    return kernel


def model_tanh(x_nchw, conv1_w, conv1_b, conv2_w, conv2_b):
    """Forward pass of ModelTanh (NCHW in / NCHW out).

    x_nchw : (B, Cin, H, W) float32
    conv1_w: (C1, Cin, 2, 2) OIHW, conv1_b: (C1,)
    conv2_w: (C2, C1, 1, 1)  OIHW, conv2_b: (C2,)
    returns (B, C2, H-1, W-1) float32
    """
    B, Cin, H, W = x_nchw.shape
    C1 = conv1_w.shape[0]
    C2 = conv2_w.shape[0]
    Ho, Wo = H - 1, W - 1

    # Fold the 1x1 conv2 into conv1 at trace time (tiny (C1,C2) matmul):
    #   y = (x (*) w1 + b1) @ w2 + b2 = x (*) (w1 @ w2) + (b1 @ w2 + b2)
    w2m = conv2_w[:, :, 0, 0].T                                   # (C1, C2)
    w1_taps = jnp.transpose(conv1_w, (2, 3, 1, 0)).reshape(4, Cin, C1)
    w_fold = jnp.einsum("tic,co->tio", w1_taps, w2m)              # (4, Cin, C2)
    w_fold = w_fold.reshape(-1).astype(jnp.float32)               # [tap,cin,c2]
    b_fold = (conv1_b @ w2m + conv2_b).astype(jnp.float32)        # (C2,)

    # v7x (2 TCs/chip): the PARALLEL GRID AXIS of length 2 gives each TC one
    # step.  v5e/v6e (1 TC): a single grid step minimizes pipeline overhead.
    steps = _grid_steps(B)
    bb = B // steps

    def run(mode):
        return pl.pallas_call(
            _make_kernel(mode),
            out_shape=jax.ShapeDtypeStruct((B, C2, Ho, Wo), jnp.float32),
            grid=(steps,),
            in_specs=[
                pl.BlockSpec((bb, Cin, H, W), lambda i: (i, 0, 0, 0)),
                pl.BlockSpec(memory_space=pltpu.MemorySpace.SMEM),
                pl.BlockSpec(memory_space=pltpu.MemorySpace.SMEM),
            ],
            out_specs=pl.BlockSpec((bb, C2, Ho, Wo), lambda i: (i, 0, 0, 0)),
            compiler_params=pltpu.CompilerParams(
                dimension_semantics=("parallel",)),
        )(x_nchw, w_fold, b_fold)

    mode = _roll_mode(H, W)
    if mode != "slice":
        try:
            return run(mode)
        except Exception:
            pass  # roll path failed to lower in-context -> slice fallback
    return run("slice")


def reference(x, conv1_w, conv1_b, conv2_w, conv2_b):
    """Pure-JAX reference (two sequential convs + tanh), NCHW throughout."""
    v1 = jax.lax.conv_general_dilated(
        x, conv1_w, window_strides=(1, 1), padding="VALID",
        dimension_numbers=("NCHW", "OIHW", "NCHW"))
    v1 = v1 + conv1_b.reshape(1, -1, 1, 1)
    v3 = jax.lax.conv_general_dilated(
        v1, conv2_w, window_strides=(1, 1), padding="VALID",
        dimension_numbers=("NCHW", "OIHW", "NCHW"))
    v3 = v3 + conv2_b.reshape(1, -1, 1, 1)
    return jnp.tanh(v3)


if __name__ == "__main__":
    key = jax.random.PRNGKey(0)
    kx, k1, k2, k3, k4 = jax.random.split(key, 5)

    # Shapes from the original module spec: x = randn(4, 3, 49, 45).
    B, Cin, H, W = 4, 3, 49, 45
    C1, C2 = 8, 5

    x = jax.random.normal(kx, (B, Cin, H, W), dtype=jnp.float32)
    conv1_w = 0.1 * jax.random.normal(k1, (C1, Cin, 2, 2), dtype=jnp.float32)
    conv1_b = 0.1 * jax.random.normal(k2, (C1,), dtype=jnp.float32)
    conv2_w = 0.1 * jax.random.normal(k3, (C2, C1, 1, 1), dtype=jnp.float32)
    conv2_b = 0.1 * jax.random.normal(k4, (C2,), dtype=jnp.float32)

    out = model_tanh(x, conv1_w, conv1_b, conv2_w, conv2_b)
    out = jax.block_until_ready(out)

    ref = jax.block_until_ready(reference(x, conv1_w, conv1_b, conv2_w, conv2_b))
    assert out.shape == (B, C2, H - 1, W - 1), out.shape
    assert jnp.allclose(out, ref, atol=1e-4, rtol=1e-4), (
        float(jnp.max(jnp.abs(out - ref))))

    print("KERNEL_OK")
</pallas_src>

<mosaic_0001>
module attributes {stable_mosaic.version = 11 : i64} {
  func.func @probe(%arg0: memref<49x45xf32, #tpu.memory_space<vmem>>, %arg1: memref<49x45xf32, #tpu.memory_space<vmem>>, %arg2: memref<49x45xf32, #tpu.memory_space<vmem>>, %arg3: memref<49x45xf32, #tpu.memory_space<vmem>>, %arg4: memref<49x45xf32, #tpu.memory_space<vmem>>) attributes {dimension_semantics = [], scalar_prefetch = 0 : i64, scratch_operands = 0 : i64, tpu.core_type = #tpu.core_type<tc>} {
    %c0 = arith.constant 0 : index
    %c0_0 = arith.constant 0 : index
    %0 = vector.load %arg0[%c0, %c0_0] : memref<49x45xf32, #tpu.memory_space<vmem>>, vector<49x45xf32>
    %c48_i32 = arith.constant 48 : i32
    %1 = tpu.dynamic_rotate %0 by %c48_i32 dim 0 : vector<49x45xf32>, i32 -> vector<49x45xf32>
    %c0_1 = arith.constant 0 : index
    %c0_2 = arith.constant 0 : index
    %2 = vector.load %arg1[%c0_1, %c0_2] : memref<49x45xf32, #tpu.memory_space<vmem>>, vector<49x45xf32>
    tpu.vector_store %arg1[%c0_1, %c0_2], %1 {strides = array<i32>} : memref<49x45xf32, #tpu.memory_space<vmem>>, vector<49x45xf32>,
    %c1_i32 = arith.constant 1 : i32
    %3 = tpu.dynamic_rotate %0 by %c1_i32 dim 0 : vector<49x45xf32>, i32 -> vector<49x45xf32>
    %c0_3 = arith.constant 0 : index
    %c0_4 = arith.constant 0 : index
    %4 = vector.load %arg2[%c0_3, %c0_4] : memref<49x45xf32, #tpu.memory_space<vmem>>, vector<49x45xf32>
    tpu.vector_store %arg2[%c0_3, %c0_4], %3 {strides = array<i32>} : memref<49x45xf32, #tpu.memory_space<vmem>>, vector<49x45xf32>,
    %c44_i32 = arith.constant 44 : i32
    %5 = tpu.dynamic_rotate %0 by %c44_i32 dim 1 : vector<49x45xf32>, i32 -> vector<49x45xf32>
    %c0_5 = arith.constant 0 : index
    %c0_6 = arith.constant 0 : index
    %6 = vector.load %arg3[%c0_5, %c0_6] : memref<49x45xf32, #tpu.memory_space<vmem>>, vector<49x45xf32>
    tpu.vector_store %arg3[%c0_5, %c0_6], %5 {strides = array<i32>} : memref<49x45xf32, #tpu.memory_space<vmem>>, vector<49x45xf32>,
    %c1_i32_7 = arith.constant 1 : i32
    %7 = tpu.dynamic_rotate %0 by %c1_i32_7 dim 1 : vector<49x45xf32>, i32 -> vector<49x45xf32>
    %c0_8 = arith.constant 0 : index
    %c0_9 = arith.constant 0 : index
    %8 = vector.load %arg4[%c0_8, %c0_9] : memref<49x45xf32, #tpu.memory_space<vmem>>, vector<49x45xf32>
    tpu.vector_store %arg4[%c0_8, %c0_9], %7 {strides = array<i32>} : memref<49x45xf32, #tpu.memory_space<vmem>>, vector<49x45xf32>,
    return
  }
}

module attributes {stable_mosaic.version = 11 : i64} {
  func.func @kernel(%arg0: i32, %arg1: memref<4x3x49x45xf32, #tpu.memory_space<vmem>>, %arg2: memref<60xf32, #tpu.memory_space<smem>>, %arg3: memref<5xf32, #tpu.memory_space<smem>>, %arg4: memref<4x5x48x44xf32, #tpu.memory_space<vmem>>) attributes {dimension_semantics = [#tpu.dimension_semantics<parallel>], iteration_bounds = array<i64: 1>, scalar_prefetch = 0 : i64, scratch_operands = 0 : i64, tpu.core_type = #tpu.core_type<tc>, window_params = [{transform_indices = @transform_0, window_bounds = array<i64: 4, 3, 49, 45>}, {transform_indices = @transform_1, window_bounds = array<i64: 60>}, {transform_indices = @transform_2, window_bounds = array<i64: 5>}, {transform_indices = @transform_3, window_bounds = array<i64: 4, 5, 48, 44>}]} {
    %c0 = arith.constant 0 : index
    %0 = memref.load %arg2[%c0] : memref<60xf32, #tpu.memory_space<smem>>
    %c1 = arith.constant 1 : index
    %1 = memref.load %arg2[%c1] : memref<60xf32, #tpu.memory_space<smem>>
    %c2 = arith.constant 2 : index
    %2 = memref.load %arg2[%c2] : memref<60xf32, #tpu.memory_space<smem>>
    %c3 = arith.constant 3 : index
    %3 = memref.load %arg2[%c3] : memref<60xf32, #tpu.memory_space<smem>>
    %c4 = arith.constant 4 : index
    %4 = memref.load %arg2[%c4] : memref<60xf32, #tpu.memory_space<smem>>
    %c5 = arith.constant 5 : index
    %5 = memref.load %arg2[%c5] : memref<60xf32, #tpu.memory_space<smem>>
    %c6 = arith.constant 6 : index
    %6 = memref.load %arg2[%c6] : memref<60xf32, #tpu.memory_space<smem>>
    %c7 = arith.constant 7 : index
    %7 = memref.load %arg2[%c7] : memref<60xf32, #tpu.memory_space<smem>>
    %c8 = arith.constant 8 : index
    %8 = memref.load %arg2[%c8] : memref<60xf32, #tpu.memory_space<smem>>
    %c9 = arith.constant 9 : index
    %9 = memref.load %arg2[%c9] : memref<60xf32, #tpu.memory_space<smem>>
    %c10 = arith.constant 10 : index
    %10 = memref.load %arg2[%c10] : memref<60xf32, #tpu.memory_space<smem>>
    %c11 = arith.constant 11 : index
    %11 = memref.load %arg2[%c11] : memref<60xf32, #tpu.memory_space<smem>>
    %c12 = arith.constant 12 : index
    %12 = memref.load %arg2[%c12] : memref<60xf32, #tpu.memory_space<smem>>
    %c13 = arith.constant 13 : index
    %13 = memref.load %arg2[%c13] : memref<60xf32, #tpu.memory_space<smem>>
    %c14 = arith.constant 14 : index
    %14 = memref.load %arg2[%c14] : memref<60xf32, #tpu.memory_space<smem>>
    %c15 = arith.constant 15 : index
    %15 = memref.load %arg2[%c15] : memref<60xf32, #tpu.memory_space<smem>>
    %c16 = arith.constant 16 : index
    %16 = memref.load %arg2[%c16] : memref<60xf32, #tpu.memory_space<smem>>
    %c17 = arith.constant 17 : index
    %17 = memref.load %arg2[%c17] : memref<60xf32, #tpu.memory_space<smem>>
    %c18 = arith.constant 18 : index
    %18 = memref.load %arg2[%c18] : memref<60xf32, #tpu.memory_space<smem>>
    %c19 = arith.constant 19 : index
    %19 = memref.load %arg2[%c19] : memref<60xf32, #tpu.memory_space<smem>>
    %c20 = arith.constant 20 : index
    %20 = memref.load %arg2[%c20] : memref<60xf32, #tpu.memory_space<smem>>
    %c21 = arith.constant 21 : index
    %21 = memref.load %arg2[%c21] : memref<60xf32, #tpu.memory_space<smem>>
    %c22 = arith.constant 22 : index
    %22 = memref.load %arg2[%c22] : memref<60xf32, #tpu.memory_space<smem>>
    %c23 = arith.constant 23 : index
    %23 = memref.load %arg2[%c23] : memref<60xf32, #tpu.memory_space<smem>>
    %c24 = arith.constant 24 : index
    %24 = memref.load %arg2[%c24] : memref<60xf32, #tpu.memory_space<smem>>
    %c25 = arith.constant 25 : index
    %25 = memref.load %arg2[%c25] : memref<60xf32, #tpu.memory_space<smem>>
    %c26 = arith.constant 26 : index
    %26 = memref.load %arg2[%c26] : memref<60xf32, #tpu.memory_space<smem>>
    %c27 = arith.constant 27 : index
    %27 = memref.load %arg2[%c27] : memref<60xf32, #tpu.memory_space<smem>>
    %c28 = arith.constant 28 : index
    %28 = memref.load %arg2[%c28] : memref<60xf32, #tpu.memory_space<smem>>
    %c29 = arith.constant 29 : index
    %29 = memref.load %arg2[%c29] : memref<60xf32, #tpu.memory_space<smem>>
    %c30 = arith.constant 30 : index
    %30 = memref.load %arg2[%c30] : memref<60xf32, #tpu.memory_space<smem>>
    %c31 = arith.constant 31 : index
    %31 = memref.load %arg2[%c31] : memref<60xf32, #tpu.memory_space<smem>>
    %c32 = arith.constant 32 : index
    %32 = memref.load %arg2[%c32] : memref<60xf32, #tpu.memory_space<smem>>
    %c33 = arith.constant 33 : index
    %33 = memref.load %arg2[%c33] : memref<60xf32, #tpu.memory_space<smem>>
    %c34 = arith.constant 34 : index
    %34 = memref.load %arg2[%c34] : memref<60xf32, #tpu.memory_space<smem>>
    %c35 = arith.constant 35 : index
    %35 = memref.load %arg2[%c35] : memref<60xf32, #tpu.memory_space<smem>>
    %c36 = arith.constant 36 : index
    %36 = memref.load %arg2[%c36] : memref<60xf32, #tpu.memory_space<smem>>
    %c37 = arith.constant 37 : index
    %37 = memref.load %arg2[%c37] : memref<60xf32, #tpu.memory_space<smem>>
    %c38 = arith.constant 38 : index
    %38 = memref.load %arg2[%c38] : memref<60xf32, #tpu.memory_space<smem>>
    %c39 = arith.constant 39 : index
    %39 = memref.load %arg2[%c39] : memref<60xf32, #tpu.memory_space<smem>>
    %c40 = arith.constant 40 : index
    %40 = memref.load %arg2[%c40] : memref<60xf32, #tpu.memory_space<smem>>
    %c41 = arith.constant 41 : index
    %41 = memref.load %arg2[%c41] : memref<60xf32, #tpu.memory_space<smem>>
    %c42 = arith.constant 42 : index
    %42 = memref.load %arg2[%c42] : memref<60xf32, #tpu.memory_space<smem>>
    %c43 = arith.constant 43 : index
    %43 = memref.load %arg2[%c43] : memref<60xf32, #tpu.memory_space<smem>>
    %c44 = arith.constant 44 : index
    %44 = memref.load %arg2[%c44] : memref<60xf32, #tpu.memory_space<smem>>
    %c45 = arith.constant 45 : index
    %45 = memref.load %arg2[%c45] : memref<60xf32, #tpu.memory_space<smem>>
    %c46 = arith.constant 46 : index
    %46 = memref.load %arg2[%c46] : memref<60xf32, #tpu.memory_space<smem>>
    %c47 = arith.constant 47 : index
    %47 = memref.load %arg2[%c47] : memref<60xf32, #tpu.memory_space<smem>>
    %c48 = arith.constant 48 : index
    %48 = memref.load %arg2[%c48] : memref<60xf32, #tpu.memory_space<smem>>
    %c49 = arith.constant 49 : index
    %49 = memref.load %arg2[%c49] : memref<60xf32, #tpu.memory_space<smem>>
    %c50 = arith.constant 50 : index
    %50 = memref.load %arg2[%c50] : memref<60xf32, #tpu.memory_space<smem>>
    %c51 = arith.constant 51 : index
    %51 = memref.load %arg2[%c51] : memref<60xf32, #tpu.memory_space<smem>>
    %c52 = arith.constant 52 : index
    %52 = memref.load %arg2[%c52] : memref<60xf32, #tpu.memory_space<smem>>
    %c53 = arith.constant 53 : index
    %53 = memref.load %arg2[%c53] : memref<60xf32, #tpu.memory_space<smem>>
    %c54 = arith.constant 54 : index
    %54 = memref.load %arg2[%c54] : memref<60xf32, #tpu.memory_space<smem>>
    %c55 = arith.constant 55 : index
    %55 = memref.load %arg2[%c55] : memref<60xf32, #tpu.memory_space<smem>>
    %c56 = arith.constant 56 : index
    %56 = memref.load %arg2[%c56] : memref<60xf32, #tpu.memory_space<smem>>
    %c57 = arith.constant 57 : index
    %57 = memref.load %arg2[%c57] : memref<60xf32, #tpu.memory_space<smem>>
    %c58 = arith.constant 58 : index
    %58 = memref.load %arg2[%c58] : memref<60xf32, #tpu.memory_space<smem>>
    %c59 = arith.constant 59 : index
    %59 = memref.load %arg2[%c59] : memref<60xf32, #tpu.memory_space<smem>>
    %c0_0 = arith.constant 0 : index
    %60 = memref.load %arg3[%c0_0] : memref<5xf32, #tpu.memory_space<smem>>
    %c1_1 = arith.constant 1 : index
    %61 = memref.load %arg3[%c1_1] : memref<5xf32, #tpu.memory_space<smem>>
    %c2_2 = arith.constant 2 : index
    %62 = memref.load %arg3[%c2_2] : memref<5xf32, #tpu.memory_space<smem>>
    %c3_3 = arith.constant 3 : index
    %63 = memref.load %arg3[%c3_3] : memref<5xf32, #tpu.memory_space<smem>>
    %c4_4 = arith.constant 4 : index
    %64 = memref.load %arg3[%c4_4] : memref<5xf32, #tpu.memory_space<smem>>
    %c0_i32 = arith.constant 0 : i32
    %c4_i32 = arith.constant 4 : i32
    %65 = arith.addi %c0_i32, %c4_i32 : i32
    %c1_i32 = arith.constant 1 : i32
    scf.for %arg5 = %c0_i32 to %65 step %c1_i32  : i32 {
      %cst = arith.constant 0.000000e+00 : f32
      %66 = vector.broadcast %cst : f32 to vector<48x44xf32>
      %cst_6 = arith.constant 0.000000e+00 : f32
      %67 = vector.broadcast %cst_6 : f32 to vector<48x44xf32>
      %cst_7 = arith.constant 0.000000e+00 : f32
      %68 = vector.broadcast %cst_7 : f32 to vector<48x44xf32>
      %cst_8 = arith.constant 0.000000e+00 : f32
      %69 = vector.broadcast %cst_8 : f32 to vector<48x44xf32>
      %cst_9 = arith.constant 0.000000e+00 : f32
      %70 = vector.broadcast %cst_9 : f32 to vector<48x44xf32>
      %71 = arith.index_cast %arg5 : i32 to index
      %c0_10 = arith.constant 0 : index
      %c0_11 = arith.constant 0 : index
      %c0_12 = arith.constant 0 : index
      %72 = vector.load %arg1[%71, %c0_10, %c0_11, %c0_12] : memref<4x3x49x45xf32, #tpu.memory_space<vmem>>, vector<1x1x49x45xf32>
      %73 = vector.shape_cast %72 : vector<1x1x49x45xf32> to vector<49x45xf32>
      %74 = vector.extract_strided_slice %73 {offsets = [0, 0], sizes = [48, 44], strides = [1, 1]} : vector<49x45xf32> to vector<48x44xf32>
      %75 = vector.extract_strided_slice %73 {offsets = [0, 1], sizes = [48, 44], strides = [1, 1]} : vector<49x45xf32> to vector<48x44xf32>
      %76 = vector.extract_strided_slice %73 {offsets = [1, 0], sizes = [48, 44], strides = [1, 1]} : vector<49x45xf32> to vector<48x44xf32>
      %77 = vector.extract_strided_slice %73 {offsets = [1, 1], sizes = [48, 44], strides = [1, 1]} : vector<49x45xf32> to vector<48x44xf32>
      %78 = vector.broadcast %0 : f32 to vector<48x44xf32>
      %79 = arith.mulf %74, %78 : vector<48x44xf32>
      %80 = arith.addf %66, %79 : vector<48x44xf32>
      %81 = vector.broadcast %1 : f32 to vector<48x44xf32>
      %82 = arith.mulf %74, %81 : vector<48x44xf32>
      %83 = arith.addf %67, %82 : vector<48x44xf32>
      %84 = vector.broadcast %2 : f32 to vector<48x44xf32>
      %85 = arith.mulf %74, %84 : vector<48x44xf32>
      %86 = arith.addf %68, %85 : vector<48x44xf32>
      %87 = vector.broadcast %3 : f32 to vector<48x44xf32>
      %88 = arith.mulf %74, %87 : vector<48x44xf32>
      %89 = arith.addf %69, %88 : vector<48x44xf32>
      %90 = vector.broadcast %4 : f32 to vector<48x44xf32>
      %91 = arith.mulf %74, %90 : vector<48x44xf32>
      %92 = arith.addf %70, %91 : vector<48x44xf32>
      %93 = vector.broadcast %15 : f32 to vector<48x44xf32>
      %94 = arith.mulf %75, %93 : vector<48x44xf32>
      %95 = arith.addf %80, %94 : vector<48x44xf32>
      %96 = vector.broadcast %16 : f32 to vector<48x44xf32>
      %97 = arith.mulf %75, %96 : vector<48x44xf32>
      %98 = arith.addf %83, %97 : vector<48x44xf32>
      %99 = vector.broadcast %17 : f32 to vector<48x44xf32>
      %100 = arith.mulf %75, %99 : vector<48x44xf32>
      %101 = arith.addf %86, %100 : vector<48x44xf32>
      %102 = vector.broadcast %18 : f32 to vector<48x44xf32>
      %103 = arith.mulf %75, %102 : vector<48x44xf32>
      %104 = arith.addf %89, %103 : vector<48x44xf32>
      %105 = vector.broadcast %19 : f32 to vector<48x44xf32>
      %106 = arith.mulf %75, %105 : vector<48x44xf32>
      %107 = arith.addf %92, %106 : vector<48x44xf32>
      %108 = vector.broadcast %30 : f32 to vector<48x44xf32>
      %109 = arith.mulf %76, %108 : vector<48x44xf32>
      %110 = arith.addf %95, %109 : vector<48x44xf32>
      %111 = vector.broadcast %31 : f32 to vector<48x44xf32>
      %112 = arith.mulf %76, %111 : vector<48x44xf32>
      %113 = arith.addf %98, %112 : vector<48x44xf32>
      %114 = vector.broadcast %32 : f32 to vector<48x44xf32>
      %115 = arith.mulf %76, %114 : vector<48x44xf32>
      %116 = arith.addf %101, %115 : vector<48x44xf32>
      %117 = vector.broadcast %33 : f32 to vector<48x44xf32>
      %118 = arith.mulf %76, %117 : vector<48x44xf32>
      %119 = arith.addf %104, %118 : vector<48x44xf32>
      %120 = vector.broadcast %34 : f32 to vector<48x44xf32>
      %121 = arith.mulf %76, %120 : vector<48x44xf32>
      %122 = arith.addf %107, %121 : vector<48x44xf32>
      %123 = vector.broadcast %45 : f32 to vector<48x44xf32>
      %124 = arith.mulf %77, %123 : vector<48x44xf32>
      %125 = arith.addf %110, %124 : vector<48x44xf32>
      %126 = vector.broadcast %46 : f32 to vector<48x44xf32>
      %127 = arith.mulf %77, %126 : vector<48x44xf32>
      %128 = arith.addf %113, %127 : vector<48x44xf32>
      %129 = vector.broadcast %47 : f32 to vector<48x44xf32>
      %130 = arith.mulf %77, %129 : vector<48x44xf32>
      %131 = arith.addf %116, %130 : vector<48x44xf32>
      %132 = vector.broadcast %48 : f32 to vector<48x44xf32>
      %133 = arith.mulf %77, %132 : vector<48x44xf32>
      %134 = arith.addf %119, %133 : vector<48x44xf32>
      %135 = vector.broadcast %49 : f32 to vector<48x44xf32>
      %136 = arith.mulf %77, %135 : vector<48x44xf32>
      %137 = arith.addf %122, %136 : vector<48x44xf32>
      %138 = arith.index_cast %arg5 : i32 to index
      %c1_13 = arith.constant 1 : index
      %c0_14 = arith.constant 0 : index
      %c0_15 = arith.constant 0 : index
      %139 = vector.load %arg1[%138, %c1_13, %c0_14, %c0_15] : memref<4x3x49x45xf32, #tpu.memory_space<vmem>>, vector<1x1x49x45xf32>
      %140 = vector.shape_cast %139 : vector<1x1x49x45xf32> to vector<49x45xf32>
      %141 = vector.extract_strided_slice %140 {offsets = [0, 0], sizes = [48, 44], strides = [1, 1]} : vector<49x45xf32> to vector<48x44xf32>
      %142 = vector.extract_strided_slice %140 {offsets = [0, 1], sizes = [48, 44], strides = [1, 1]} : vector<49x45xf32> to vector<48x44xf32>
      %143 = vector.extract_strided_slice %140 {offsets = [1, 0], sizes = [48, 44], strides = [1, 1]} : vector<49x45xf32> to vector<48x44xf32>
      %144 = vector.extract_strided_slice %140 {offsets = [1, 1], sizes = [48, 44], strides = [1, 1]} : vector<49x45xf32> to vector<48x44xf32>
      %145 = vector.broadcast %5 : f32 to vector<48x44xf32>
      %146 = arith.mulf %141, %145 : vector<48x44xf32>
      %147 = arith.addf %125, %146 : vector<48x44xf32>
      %148 = vector.broadcast %6 : f32 to vector<48x44xf32>
      %149 = arith.mulf %141, %148 : vector<48x44xf32>
      %150 = arith.addf %128, %149 : vector<48x44xf32>
      %151 = vector.broadcast %7 : f32 to vector<48x44xf32>
      %152 = arith.mulf %141, %151 : vector<48x44xf32>
      %153 = arith.addf %131, %152 : vector<48x44xf32>
      %154 = vector.broadcast %8 : f32 to vector<48x44xf32>
      %155 = arith.mulf %141, %154 : vector<48x44xf32>
      %156 = arith.addf %134, %155 : vector<48x44xf32>
      %157 = vector.broadcast %9 : f32 to vector<48x44xf32>
      %158 = arith.mulf %141, %157 : vector<48x44xf32>
      %159 = arith.addf %137, %158 : vector<48x44xf32>
      %160 = vector.broadcast %20 : f32 to vector<48x44xf32>
      %161 = arith.mulf %142, %160 : vector<48x44xf32>
      %162 = arith.addf %147, %161 : vector<48x44xf32>
      %163 = vector.broadcast %21 : f32 to vector<48x44xf32>
      %164 = arith.mulf %142, %163 : vector<48x44xf32>
      %165 = arith.addf %150, %164 : vector<48x44xf32>
      %166 = vector.broadcast %22 : f32 to vector<48x44xf32>
      %167 = arith.mulf %142, %166 : vector<48x44xf32>
      %168 = arith.addf %153, %167 : vector<48x44xf32>
      %169 = vector.broadcast %23 : f32 to vector<48x44xf32>
      %170 = arith.mulf %142, %169 : vector<48x44xf32>
      %171 = arith.addf %156, %170 : vector<48x44xf32>
      %172 = vector.broadcast %24 : f32 to vector<48x44xf32>
      %173 = arith.mulf %142, %172 : vector<48x44xf32>
      %174 = arith.addf %159, %173 : vector<48x44xf32>
      %175 = vector.broadcast %35 : f32 to vector<48x44xf32>
      %176 = arith.mulf %143, %175 : vector<48x44xf32>
      %177 = arith.addf %162, %176 : vector<48x44xf32>
      %178 = vector.broadcast %36 : f32 to vector<48x44xf32>
      %179 = arith.mulf %143, %178 : vector<48x44xf32>
      %180 = arith.addf %165, %179 : vector<48x44xf32>
      %181 = vector.broadcast %37 : f32 to vector<48x44xf32>
      %182 = arith.mulf %143, %181 : vector<48x44xf32>
      %183 = arith.addf %168, %182 : vector<48x44xf32>
      %184 = vector.broadcast %38 : f32 to vector<48x44xf32>
      %185 = arith.mulf %143, %184 : vector<48x44xf32>
      %186 = arith.addf %171, %185 : vector<48x44xf32>
      %187 = vector.broadcast %39 : f32 to vector<48x44xf32>
      %188 = arith.mulf %143, %187 : vector<48x44xf32>
      %189 = arith.addf %174, %188 : vector<48x44xf32>
      %190 = vector.broadcast %50 : f32 to vector<48x44xf32>
      %191 = arith.mulf %144, %190 : vector<48x44xf32>
      %192 = arith.addf %177, %191 : vector<48x44xf32>
      %193 = vector.broadcast %51 : f32 to vector<48x44xf32>
      %194 = arith.mulf %144, %193 : vector<48x44xf32>
      %195 = arith.addf %180, %194 : vector<48x44xf32>
      %196 = vector.broadcast %52 : f32 to vector<48x44xf32>
      %197 = arith.mulf %144, %196 : vector<48x44xf32>
      %198 = arith.addf %183, %197 : vector<48x44xf32>
      %199 = vector.broadcast %53 : f32 to vector<48x44xf32>
      %200 = arith.mulf %144, %199 : vector<48x44xf32>
      %201 = arith.addf %186, %200 : vector<48x44xf32>
      %202 = vector.broadcast %54 : f32 to vector<48x44xf32>
      %203 = arith.mulf %144, %202 : vector<48x44xf32>
      %204 = arith.addf %189, %203 : vector<48x44xf32>
      %205 = arith.index_cast %arg5 : i32 to index
      %c2_16 = arith.constant 2 : index
      %c0_17 = arith.constant 0 : index
      %c0_18 = arith.constant 0 : index
      %206 = vector.load %arg1[%205, %c2_16, %c0_17, %c0_18] : memref<4x3x49x45xf32, #tpu.memory_space<vmem>>, vector<1x1x49x45xf32>
      %207 = vector.shape_cast %206 : vector<1x1x49x45xf32> to vector<49x45xf32>
      %208 = vector.extract_strided_slice %207 {offsets = [0, 0], sizes = [48, 44], strides = [1, 1]} : vector<49x45xf32> to vector<48x44xf32>
      %209 = vector.extract_strided_slice %207 {offsets = [0, 1], sizes = [48, 44], strides = [1, 1]} : vector<49x45xf32> to vector<48x44xf32>
      %210 = vector.extract_strided_slice %207 {offsets = [1, 0], sizes = [48, 44], strides = [1, 1]} : vector<49x45xf32> to vector<48x44xf32>
      %211 = vector.extract_strided_slice %207 {offsets = [1, 1], sizes = [48, 44], strides = [1, 1]} : vector<49x45xf32> to vector<48x44xf32>
      %212 = vector.broadcast %10 : f32 to vector<48x44xf32>
      %213 = arith.mulf %208, %212 : vector<48x44xf32>
      %214 = arith.addf %192, %213 : vector<48x44xf32>
      %215 = vector.broadcast %11 : f32 to vector<48x44xf32>
      %216 = arith.mulf %208, %215 : vector<48x44xf32>
      %217 = arith.addf %195, %216 : vector<48x44xf32>
      %218 = vector.broadcast %12 : f32 to vector<48x44xf32>
      %219 = arith.mulf %208, %218 : vector<48x44xf32>
      %220 = arith.addf %198, %219 : vector<48x44xf32>
      %221 = vector.broadcast %13 : f32 to vector<48x44xf32>
      %222 = arith.mulf %208, %221 : vector<48x44xf32>
      %223 = arith.addf %201, %222 : vector<48x44xf32>
      %224 = vector.broadcast %14 : f32 to vector<48x44xf32>
      %225 = arith.mulf %208, %224 : vector<48x44xf32>
      %226 = arith.addf %204, %225 : vector<48x44xf32>
      %227 = vector.broadcast %25 : f32 to vector<48x44xf32>
      %228 = arith.mulf %209, %227 : vector<48x44xf32>
      %229 = arith.addf %214, %228 : vector<48x44xf32>
      %230 = vector.broadcast %26 : f32 to vector<48x44xf32>
      %231 = arith.mulf %209, %230 : vector<48x44xf32>
      %232 = arith.addf %217, %231 : vector<48x44xf32>
      %233 = vector.broadcast %27 : f32 to vector<48x44xf32>
      %234 = arith.mulf %209, %233 : vector<48x44xf32>
      %235 = arith.addf %220, %234 : vector<48x44xf32>
      %236 = vector.broadcast %28 : f32 to vector<48x44xf32>
      %237 = arith.mulf %209, %236 : vector<48x44xf32>
      %238 = arith.addf %223, %237 : vector<48x44xf32>
      %239 = vector.broadcast %29 : f32 to vector<48x44xf32>
      %240 = arith.mulf %209, %239 : vector<48x44xf32>
      %241 = arith.addf %226, %240 : vector<48x44xf32>
      %242 = vector.broadcast %40 : f32 to vector<48x44xf32>
      %243 = arith.mulf %210, %242 : vector<48x44xf32>
      %244 = arith.addf %229, %243 : vector<48x44xf32>
      %245 = vector.broadcast %41 : f32 to vector<48x44xf32>
      %246 = arith.mulf %210, %245 : vector<48x44xf32>
      %247 = arith.addf %232, %246 : vector<48x44xf32>
      %248 = vector.broadcast %42 : f32 to vector<48x44xf32>
      %249 = arith.mulf %210, %248 : vector<48x44xf32>
      %250 = arith.addf %235, %249 : vector<48x44xf32>
      %251 = vector.broadcast %43 : f32 to vector<48x44xf32>
      %252 = arith.mulf %210, %251 : vector<48x44xf32>
      %253 = arith.addf %238, %252 : vector<48x44xf32>
      %254 = vector.broadcast %44 : f32 to vector<48x44xf32>
      %255 = arith.mulf %210, %254 : vector<48x44xf32>
      %256 = arith.addf %241, %255 : vector<48x44xf32>
      %257 = vector.broadcast %55 : f32 to vector<48x44xf32>
      %258 = arith.mulf %211, %257 : vector<48x44xf32>
      %259 = arith.addf %244, %258 : vector<48x44xf32>
      %260 = vector.broadcast %56 : f32 to vector<48x44xf32>
      %261 = arith.mulf %211, %260 : vector<48x44xf32>
      %262 = arith.addf %247, %261 : vector<48x44xf32>
      %263 = vector.broadcast %57 : f32 to vector<48x44xf32>
      %264 = arith.mulf %211, %263 : vector<48x44xf32>
      %265 = arith.addf %250, %264 : vector<48x44xf32>
      %266 = vector.broadcast %58 : f32 to vector<48x44xf32>
      %267 = arith.mulf %211, %266 : vector<48x44xf32>
      %268 = arith.addf %253, %267 : vector<48x44xf32>
      %269 = vector.broadcast %59 : f32 to vector<48x44xf32>
      %270 = arith.mulf %211, %269 : vector<48x44xf32>
      %271 = arith.addf %256, %270 : vector<48x44xf32>
      %272 = vector.broadcast %60 : f32 to vector<48x44xf32>
      %273 = arith.addf %259, %272 : vector<48x44xf32>
      %274 = math.tanh %273 : vector<48x44xf32>
      %275 = arith.index_cast %arg5 : i32 to index
      %c0_19 = arith.constant 0 : index
      %c0_20 = arith.constant 0 : index
      %c0_21 = arith.constant 0 : index
      %276 = vector.load %arg4[%275, %c0_19, %c0_20, %c0_21] : memref<4x5x48x44xf32, #tpu.memory_space<vmem>>, vector<1x1x48x44xf32>
      %277 = vector.shape_cast %276 : vector<1x1x48x44xf32> to vector<48x44xf32>
      %278 = vector.shape_cast %274 : vector<48x44xf32> to vector<1x1x48x44xf32>
      tpu.vector_store %arg4[%275, %c0_19, %c0_20, %c0_21], %278 {strides = array<i32>} : memref<4x5x48x44xf32, #tpu.memory_space<vmem>>, vector<1x1x48x44xf32>,
      %279 = vector.broadcast %61 : f32 to vector<48x44xf32>
      %280 = arith.addf %262, %279 : vector<48x44xf32>
      %281 = math.tanh %280 : vector<48x44xf32>
      %282 = arith.index_cast %arg5 : i32 to index
      %c1_22 = arith.constant 1 : index
      %c0_23 = arith.constant 0 : index
      %c0_24 = arith.constant 0 : index
      %283 = vector.load %arg4[%282, %c1_22, %c0_23, %c0_24] : memref<4x5x48x44xf32, #tpu.memory_space<vmem>>, vector<1x1x48x44xf32>
      %284 = vector.shape_cast %283 : vector<1x1x48x44xf32> to vector<48x44xf32>
      %285 = vector.shape_cast %281 : vector<48x44xf32> to vector<1x1x48x44xf32>
      tpu.vector_store %arg4[%282, %c1_22, %c0_23, %c0_24], %285 {strides = array<i32>} : memref<4x5x48x44xf32, #tpu.memory_space<vmem>>, vector<1x1x48x44xf32>,
      %286 = vector.broadcast %62 : f32 to vector<48x44xf32>
      %287 = arith.addf %265, %286 : vector<48x44xf32>
      %288 = math.tanh %287 : vector<48x44xf32>
      %289 = arith.index_cast %arg5 : i32 to index
      %c2_25 = arith.constant 2 : index
      %c0_26 = arith.constant 0 : index
      %c0_27 = arith.constant 0 : index
      %290 = vector.load %arg4[%289, %c2_25, %c0_26, %c0_27] : memref<4x5x48x44xf32, #tpu.memory_space<vmem>>, vector<1x1x48x44xf32>
      %291 = vector.shape_cast %290 : vector<1x1x48x44xf32> to vector<48x44xf32>
      %292 = vector.shape_cast %288 : vector<48x44xf32> to vector<1x1x48x44xf32>
      tpu.vector_store %arg4[%289, %c2_25, %c0_26, %c0_27], %292 {strides = array<i32>} : memref<4x5x48x44xf32, #tpu.memory_space<vmem>>, vector<1x1x48x44xf32>,
      %293 = vector.broadcast %63 : f32 to vector<48x44xf32>
      %294 = arith.addf %268, %293 : vector<48x44xf32>
      %295 = math.tanh %294 : vector<48x44xf32>
      %296 = arith.index_cast %arg5 : i32 to index
      %c3_28 = arith.constant 3 : index
      %c0_29 = arith.constant 0 : index
      %c0_30 = arith.constant 0 : index
      %297 = vector.load %arg4[%296, %c3_28, %c0_29, %c0_30] : memref<4x5x48x44xf32, #tpu.memory_space<vmem>>, vector<1x1x48x44xf32>
      %298 = vector.shape_cast %297 : vector<1x1x48x44xf32> to vector<48x44xf32>
      %299 = vector.shape_cast %295 : vector<48x44xf32> to vector<1x1x48x44xf32>
      tpu.vector_store %arg4[%296, %c3_28, %c0_29, %c0_30], %299 {strides = array<i32>} : memref<4x5x48x44xf32, #tpu.memory_space<vmem>>, vector<1x1x48x44xf32>,
      %300 = vector.broadcast %64 : f32 to vector<48x44xf32>
      %301 = arith.addf %271, %300 : vector<48x44xf32>
      %302 = math.tanh %301 : vector<48x44xf32>
      %303 = arith.index_cast %arg5 : i32 to index
      %c4_31 = arith.constant 4 : index
      %c0_32 = arith.constant 0 : index
      %c0_33 = arith.constant 0 : index
      %304 = vector.load %arg4[%303, %c4_31, %c0_32, %c0_33] : memref<4x5x48x44xf32, #tpu.memory_space<vmem>>, vector<1x1x48x44xf32>
      %305 = vector.shape_cast %304 : vector<1x1x48x44xf32> to vector<48x44xf32>
      %306 = vector.shape_cast %302 : vector<48x44xf32> to vector<1x1x48x44xf32>
      tpu.vector_store %arg4[%303, %c4_31, %c0_32, %c0_33], %306 {strides = array<i32>} : memref<4x5x48x44xf32, #tpu.memory_space<vmem>>, vector<1x1x48x44xf32>,
    }
    %c4_i32_5 = arith.constant 4 : i32
    return
  }
  func.func @transform_0(%arg0: i32) -> (i32, i32, i32, i32) {
    %c0_i32 = arith.constant 0 : i32
    %c0_i32_0 = arith.constant 0 : i32
    %c0_i32_1 = arith.constant 0 : i32
    %c0_i32_2 = arith.constant 0 : i32
    return %arg0, %c0_i32, %c0_i32_0, %c0_i32_1 : i32, i32, i32, i32
  }
  func.func @transform_1(%arg0: i32) -> i32 {
    %c0_i32 = arith.constant 0 : i32
    %c0_i32_0 = arith.constant 0 : i32
    return %c0_i32 : i32
  }
  func.func @transform_2(%arg0: i32) -> i32 {
    %c0_i32 = arith.constant 0 : i32
    %c0_i32_0 = arith.constant 0 : i32
    return %c0_i32 : i32
  }
  func.func @transform_3(%arg0: i32) -> (i32, i32, i32, i32) {
    %c0_i32 = arith.constant 0 : i32
    %c0_i32_0 = arith.constant 0 : i32
    %c0_i32_1 = arith.constant 0 : i32
    %c0_i32_2 = arith.constant 0 : i32
    return %arg0, %c0_i32, %c0_i32_0, %c0_i32_1 : i32, i32, i32, i32
  }
}

</mosaic_0001>

<llo_original>
// kernel: tpu_custom_call.1
$region0: #{tpu_custom_call.1}
  #allocation0 [shape = 'u32[]', space=smem, size = 0x4, offset = 0x4, fixed_abs, tag = 'smem constant byte address 0x4 - core index']
  #allocation1 [shape = 'u32[144,128]{1,0:T(1,128)}', space=vmem, size = 0x12000, scoped, tag = 'internal scratch']
  %s0 = inlined_call_operand.vmem [shape: f32[49,45], index: 0, kind: input, shape index: {}]
  %s1 = inlined_call_operand.vmem [shape: f32[49,45], index: 1, kind: output, shape index: {0}]
  %s2 = inlined_call_operand.vmem [shape: f32[49,45], index: 2, kind: output, shape index: {1}]
  %s3 = inlined_call_operand.vmem [shape: f32[49,45], index: 3, kind: output, shape index: {2}]
  %s4 = inlined_call_operand.vmem [shape: f32[49,45], index: 4, kind: output, shape index: {3}]
  %5 = xla_tuple %s1, %s2, %s3, %s4
  %s6 = sld [smem:[#allocation0]]
  $region38: #{tpu_custom_call.1} parent=0
    _
  %s8 = ssub.s32 1, %s6
  %s9 = scalar_select 0, %s8, %s6
  // Predicated region
  $region2: #{tpu_custom_call.1} parent=0 // pred_check
    _
  $region3: #{tpu_custom_call.1} parent=0 // pred_check_branch
    %11 = sbr.rel (0) target = $region5
  $region4: #{tpu_custom_call.1} parent=0 // pred_region
    _
  $region5: #{tpu_custom_call.1} parent=0 // pred_fallthru
    _
  %v12 = vld [vmem:[%s0] sm:$0xff]
  %v13 = vld [vmem:[%s0 + $0x8] sm:$0xff]
  %v14 = vld [vmem:[%s0 + $0x10] sm:$0xff]
  %v15 = vld [vmem:[%s0 + $0x18] sm:$0xff]
  %v16 = vld [vmem:[%s0 + $0x20] sm:$0xff]
  %v17 = vld [vmem:[%s0 + $0x28] sm:$0xff]
  %v18 = vld [vmem:[%s0 + $0x30] sm:$0x1]
  %vm19 = vcmask 1047553
  %v20 = vrot.slane %v12, 7
  %v21 = vsel %vm19, %v20, %v18
  %vm22 = vcmask 367617
  %23 = vst.msk [vmem:[%s1 - $0x1] sm:$0xfe] %vm22, %v12
  %vm24 = vcmask 367616
  %25 = vst.msk [vmem:[%s1 + $0x7] sm:$0xff] %vm24, %v13
  %26 = vst.msk [vmem:[%s1 + $0xf] sm:$0xff] %vm24, %v14
  %27 = vst.msk [vmem:[%s1 + $0x17] sm:$0xff] %vm24, %v15
  %28 = vst.msk [vmem:[%s1 + $0x1f] sm:$0xff] %vm24, %v16
  %29 = vst.msk [vmem:[%s1 + $0x27] sm:$0xff] %vm24, %v17
  %vm30 = vcmask 361472
  %31 = vst.msk [vmem:[%s1 + $0x2f] sm:$0x3] %vm30, %v21
  %v32 = vrot.slane %v13, 7
  %v33 = vrot.slane %v14, 7
  %v34 = vrot.slane %v15, 7
  %v35 = vrot.slane %v16, 7
  %v36 = vrot.slane %v17, 7
  %v37 = vrot.slane %v21, 7
  %v38 = vsel %vm19, %v32, %v20
  %v39 = vsel %vm19, %v33, %v32
  %v40 = vsel %vm19, %v34, %v33
  %v41 = vsel %vm19, %v35, %v34
  %v42 = vsel %vm19, %v36, %v35
  %v43 = vsel %vm19, %v37, %v36
  %44 = vst.msk [vmem:[%s2] sm:$0xff] %vm24, %v21
  %45 = vst.msk [vmem:[%s2 + $0x8] sm:$0xff] %vm24, %v38
  %46 = vst.msk [vmem:[%s2 + $0x10] sm:$0xff] %vm24, %v39
  %47 = vst.msk [vmem:[%s2 + $0x18] sm:$0xff] %vm24, %v40
  %48 = vst.msk [vmem:[%s2 + $0x20] sm:$0xff] %vm24, %v41
  %49 = vst.msk [vmem:[%s2 + $0x28] sm:$0xff] %vm24, %v42
  %vm50 = vcmask 360448
  %51 = vst.msk [vmem:[%s2 + $0x30] sm:$0x1] %vm50, %v43
  %vm52 = vcmask 1047912
  %53 = vrot.lane.b32.xlu0 %v12, 45
  %v54 = vpop.permute.xlu0 %53
  %v55 = vsel %vm52, %v54, %v12
  %56 = vrot.lane.b32.xlu0 %v13, 45
  %v57 = vpop.permute.xlu0 %56
  %v58 = vsel %vm52, %v57, %v13
  %59 = vrot.lane.b32.xlu0 %v14, 45
  %v60 = vpop.permute.xlu0 %59
  %v61 = vsel %vm52, %v60, %v14
  %62 = vrot.lane.b32.xlu0 %v15, 45
  %v63 = vpop.permute.xlu0 %62
  %v64 = vsel %vm52, %v63, %v15
  %65 = vrot.lane.b32.xlu0 %v16, 45
  %v66 = vpop.permute.xlu0 %65
  %v67 = vsel %vm52, %v66, %v16
  %68 = vrot.lane.b32.xlu0 %v17, 45
  %v69 = vpop.permute.xlu0 %68
  %v70 = vsel %vm52, %v69, %v17
  %71 = vrot.lane.b32.xlu0 %v18, 45
  %v72 = vpop.permute.xlu0 %71
  %v73 = vsel %vm52, %v72, %v18
  %74 = vrot.lane.b32.xlu0 %v55, 45
  %v75 = vpop.permute.xlu0 %74
  %76 = vrot.lane.b32.xlu0 %v58, 45
  %v77 = vpop.permute.xlu0 %76
  %78 = vrot.lane.b32.xlu0 %v61, 45
  %v79 = vpop.permute.xlu0 %78
  %80 = vrot.lane.b32.xlu0 %v64, 45
  %v81 = vpop.permute.xlu0 %80
  %82 = vrot.lane.b32.xlu0 %v67, 45
  %v83 = vpop.permute.xlu0 %82
  %84 = vrot.lane.b32.xlu0 %v70, 45
  %v85 = vpop.permute.xlu0 %84
  %86 = vrot.lane.b32.xlu0 %v73, 45
  %v87 = vpop.permute.xlu0 %86
  %v88 = vsel %vm52, %v75, %v12
  %v89 = vsel %vm52, %v77, %v13
  %v90 = vsel %vm52, %v79, %v14
  %v91 = vsel %vm52, %v81, %v15
  %v92 = vsel %vm52, %v83, %v16
  %v93 = vsel %vm52, %v85, %v17
  %v94 = vsel %vm52, %v87, %v18
  %102 = vrot.lane.b32.xlu0 %v88, 127
  %v103 = vpop.permute.xlu0 %102
  %104 = vrot.lane.b32.xlu0 %v89, 127
  %v105 = vpop.permute.xlu0 %104
  %106 = vrot.lane.b32.xlu0 %v90, 127
  %v107 = vpop.permute.xlu0 %106
  %108 = vrot.lane.b32.xlu0 %v91, 127
  %v109 = vpop.permute.xlu0 %108
  %110 = vrot.lane.b32.xlu0 %v92, 127
  %v111 = vpop.permute.xlu0 %110
  %112 = vrot.lane.b32.xlu0 %v93, 127
  %v113 = vpop.permute.xlu0 %112
  %114 = vrot.lane.b32.xlu0 %v94, 127
  %v115 = vpop.permute.xlu0 %114
  %123 = vst.msk [vmem:[%s3] sm:$0xff] %vm24, %v103
  %124 = vst.msk [vmem:[%s3 + $0x8] sm:$0xff] %vm24, %v105
  %125 = vst.msk [vmem:[%s3 + $0x10] sm:$0xff] %vm24, %v107
  %126 = vst.msk [vmem:[%s3 + $0x18] sm:$0xff] %vm24, %v109
  %127 = vst.msk [vmem:[%s3 + $0x20] sm:$0xff] %vm24, %v111
  %128 = vst.msk [vmem:[%s3 + $0x28] sm:$0xff] %vm24, %v113
  %129 = vst.msk [vmem:[%s3 + $0x30] sm:$0x1] %vm50, %v115
  %130 = vrot.lane.b32.xlu0 %v88, 84
  %v131 = vpop.permute.xlu0 %130
  %132 = vrot.lane.b32.xlu0 %v89, 84
  %v133 = vpop.permute.xlu0 %132
  %134 = vrot.lane.b32.xlu0 %v90, 84
  %v135 = vpop.permute.xlu0 %134
  %136 = vrot.lane.b32.xlu0 %v91, 84
  %v137 = vpop.permute.xlu0 %136
  %138 = vrot.lane.b32.xlu0 %v92, 84
  %v139 = vpop.permute.xlu0 %138
  %140 = vrot.lane.b32.xlu0 %v93, 84
  %v141 = vpop.permute.xlu0 %140
  %142 = vrot.lane.b32.xlu0 %v94, 84
  %v143 = vpop.permute.xlu0 %142
  %151 = vst.msk [vmem:[%s4] sm:$0xff] %vm24, %v131
  %152 = vst.msk [vmem:[%s4 + $0x8] sm:$0xff] %vm24, %v133
  %153 = vst.msk [vmem:[%s4 + $0x10] sm:$0xff] %vm24, %v135
  %154 = vst.msk [vmem:[%s4 + $0x18] sm:$0xff] %vm24, %v137
  %155 = vst.msk [vmem:[%s4 + $0x20] sm:$0xff] %vm24, %v139
  %156 = vst.msk [vmem:[%s4 + $0x28] sm:$0xff] %vm24, %v141
  %157 = vst.msk [vmem:[%s4 + $0x30] sm:$0x1] %vm50, %v143
  // Predicated region
  $region6: #{tpu_custom_call.1} parent=0 // pred_check
    _
  $region7: #{tpu_custom_call.1} parent=0 // pred_check_branch
    %159 = sbr.rel (0) target = $region9
  $region8: #{tpu_custom_call.1} parent=0 // pred_region
    _
  $region9: #{tpu_custom_call.1} parent=0 // pred_fallthru
    _
  // Predicated region
  $region10: #{tpu_custom_call.1} parent=0 // pred_check
    _
  $region11: #{tpu_custom_call.1} parent=0 // pred_check_branch
    %161 = sbr.rel (0) target = $region13
  $region12: #{tpu_custom_call.1} parent=0 // pred_region
    _
  $region13: #{tpu_custom_call.1} parent=0 // pred_fallthru
    _
  // Predicated region
  $region14: #{tpu_custom_call.1} parent=0 // pred_check
    _
  $region15: #{tpu_custom_call.1} parent=0 // pred_check_branch
    %163 = sbr.rel (0) target = $region17
  $region16: #{tpu_custom_call.1} parent=0 // pred_region
    _
  $region17: #{tpu_custom_call.1} parent=0 // pred_fallthru
    _
  // Predicated region
  $region18: #{tpu_custom_call.1} parent=0 // pred_check
    _
  $region19: #{tpu_custom_call.1} parent=0 // pred_check_branch
    %165 = sbr.rel (0) target = $region21
  $region20: #{tpu_custom_call.1} parent=0 // pred_region
    _
  $region21: #{tpu_custom_call.1} parent=0 // pred_fallthru
    _
  // Predicated region
  $region22: #{tpu_custom_call.1} parent=0 // pred_check
    _
  $region23: #{tpu_custom_call.1} parent=0 // pred_check_branch
    %167 = sbr.rel (0) target = $region25
  $region24: #{tpu_custom_call.1} parent=0 // pred_region
    _
  $region25: #{tpu_custom_call.1} parent=0 // pred_fallthru
    _
  // Predicated region
  $region26: #{tpu_custom_call.1} parent=0 // pred_check
    _
  $region27: #{tpu_custom_call.1} parent=0 // pred_check_branch
    %169 = sbr.rel (0) target = $region29
  $region28: #{tpu_custom_call.1} parent=0 // pred_region
    _
  $region29: #{tpu_custom_call.1} parent=0 // pred_fallthru
    _
  // Predicated region
  $region30: #{tpu_custom_call.1} parent=0 // pred_check
    _
  $region31: #{tpu_custom_call.1} parent=0 // pred_check_branch
    %171 = sbr.rel (0) target = $region33
  $region32: #{tpu_custom_call.1} parent=0 // pred_region
    _
  $region33: #{tpu_custom_call.1} parent=0 // pred_fallthru
    _
  // Predicated region
  $region34: #{tpu_custom_call.1} parent=0 // pred_check
    _
  $region35: #{tpu_custom_call.1} parent=0 // pred_check_branch
    %173 = sbr.rel (0) target = $region37
  $region36: #{tpu_custom_call.1} parent=0 // pred_region
    _
  $region37: #{tpu_custom_call.1} parent=0 // pred_fallthru
    _

// kernel: tpu_custom_call.1
$region0: #{tpu_custom_call.1}
  #allocation0 [shape = 'u32[]', space=smem, size = 0x4, offset = 0x4, fixed_abs, tag = 'smem constant byte address 0x4 - core index']
  #allocation1 [shape = 'u32[144,128]{1,0:T(1,128)}', space=vmem, size = 0x12000, scoped, tag = 'internal scratch']
  %s0 = inlined_call_operand.vmem [shape: f32[4,3,49,45], index: 0, kind: input, shape index: {}]
  %s1 = inlined_call_operand.vmem [shape: f32[60], index: 1, kind: input, shape index: {}]
  %s2 = inlined_call_operand.vmem [shape: f32[5], index: 2, kind: input, shape index: {}]
  %s3 = inlined_call_operand.vmem [shape: f32[4,5,48,44], index: 3, kind: output, shape index: {}]
  %s4 = sld [smem:[#allocation0]]
  $region37: #{tpu_custom_call.1} parent=0
    _
  %s6 = ssub.s32 1, %s4
  %s7 = scalar_select 0, %s6, %s4
  $region1: #{tpu_custom_call.1} parent=0
    #allocation2 [shape = 'u8[512]{0}', space=smem, size = 0x200, scoped, tag = 'input window, operand 1, single buffered']
    #allocation3 [shape = 's32[1]{0}', space=sflag, size = 0x4, scoped, tag = 'scoped memory for tpu_custom_call.1']
    #allocation4 [shape = 'u8[512]{0}', space=smem, size = 0x200, scoped, tag = 'input window, operand 2, single buffered']
    #allocation5 [shape = 's32[1]{0}', space=sflag, size = 0x4, scoped, tag = 'scoped memory for tpu_custom_call.1']
    %8 = vsyncpa [#allocation3], 0
    %9 = vsyncpa [#allocation5], 0
    // Predicated region
    $region2: #{tpu_custom_call.1} parent=1 // pred_check
      _
    $region3: #{tpu_custom_call.1} parent=1 // pred_check_branch
      %11 = sbr.rel (0) target = $region5
    $region4: #{tpu_custom_call.1} parent=1 // pred_region
      _
    $region5: #{tpu_custom_call.1} parent=1 // pred_fallthru
      _
    // Predicated region
    $region6: #{tpu_custom_call.1} parent=1 // pred_check
      _
    $region7: #{tpu_custom_call.1} parent=1 // pred_check_branch
      %13 = sbr.rel (0) target = $region9
    $region8: #{tpu_custom_call.1} parent=1 // pred_region
      %s15 = ssub.s32 16, 16
      %16 = vsyncadd [#allocation3], %s15
      %s18 = sshll.u32 %s1, 4
      %s19 = int_to_ptr.vmem [resolvable:$true] %s18
      %21 = dma.vmem_to_smem %s19, 16, [#allocation2], [#allocation3]
    $region9: #{tpu_custom_call.1} parent=1 // pred_fallthru
      _
    // Predicated region
    $region10: #{tpu_custom_call.1} parent=1 // pred_check
      _
    $region11: #{tpu_custom_call.1} parent=1 // pred_check_branch
      %23 = sbr.rel (0) target = $region13
    $region12: #{tpu_custom_call.1} parent=1 // pred_region
      %s25 = ssub.s32 16, 16
      %26 = vsyncadd [#allocation5], %s25
      %s28 = sshll.u32 %s2, 4
      %s29 = int_to_ptr.vmem [resolvable:$true] %s28
      %31 = dma.vmem_to_smem %s29, 16, [#allocation4], [#allocation5]
    $region13: #{tpu_custom_call.1} parent=1 // pred_fallthru
      _
    // Predicated region
    $region14: #{tpu_custom_call.1} parent=1 // pred_check
      _
    $region15: #{tpu_custom_call.1} parent=1 // pred_check_branch
      %33 = sbr.rel (0) target = $region17
    $region16: #{tpu_custom_call.1} parent=1 // pred_region
      %34 = dma.done [#allocation3], 16
    $region17: #{tpu_custom_call.1} parent=1 // pred_fallthru
      _
    // Predicated region
    $region18: #{tpu_custom_call.1} parent=1 // pred_check
      _
    $region19: #{tpu_custom_call.1} parent=1 // pred_check_branch
      %36 = sbr.rel (0) target = $region21
    $region20: #{tpu_custom_call.1} parent=1 // pred_region
      %37 = dma.done [#allocation5], 16
    $region21: #{tpu_custom_call.1} parent=1 // pred_fallthru
      _
    %38 = sfence
    %s39 = sld [smem:[#allocation2]]
    %s40 = sld [smem:[#allocation2 + $0x1]]
    %s41 = sld [smem:[#allocation2 + $0x2]]
    %s42 = sld [smem:[#allocation2 + $0x3]]
    %s43 = sld [smem:[#allocation2 + $0x4]]
    %s44 = sld [smem:[#allocation2 + $0x5]]
    %s45 = sld [smem:[#allocation2 + $0x6]]
    %s46 = sld [smem:[#allocation2 + $0x7]]
    %s47 = sld [smem:[#allocation2 + $0x8]]
    %s48 = sld [smem:[#allocation2 + $0x9]]
    %s49 = sld [smem:[#allocation2 + $0xa]]
    %s50 = sld [smem:[#allocation2 + $0xb]]
    %s51 = sld [smem:[#allocation2 + $0xc]]
    %s52 = sld [smem:[#allocation2 + $0xd]]
    %s53 = sld [smem:[#allocation2 + $0xe]]
    %s54 = sld [smem:[#allocation2 + $0xf]]
    %s55 = sld [smem:[#allocation2 + $0x10]]
    %s56 = sld [smem:[#allocation2 + $0x11]]
    %s57 = sld [smem:[#allocation2 + $0x12]]
    %s58 = sld [smem:[#allocation2 + $0x13]]
    %s59 = sld [smem:[#allocation2 + $0x14]]
    %s60 = sld [smem:[#allocation2 + $0x15]]
    %s61 = sld [smem:[#allocation2 + $0x16]]
    %s62 = sld [smem:[#allocation2 + $0x17]]
    %s63 = sld [smem:[#allocation2 + $0x18]]
    %s64 = sld [smem:[#allocation2 + $0x19]]
    %s65 = sld [smem:[#allocation2 + $0x1a]]
    %s66 = sld [smem:[#allocation2 + $0x1b]]
    %s67 = sld [smem:[#allocation2 + $0x1c]]
    %s68 = sld [smem:[#allocation2 + $0x1d]]
    %s69 = sld [smem:[#allocation2 + $0x1e]]
    %s70 = sld [smem:[#allocation2 + $0x1f]]
    %s71 = sld [smem:[#allocation2 + $0x20]]
    %s72 = sld [smem:[#allocation2 + $0x21]]
    %s73 = sld [smem:[#allocation2 + $0x22]]
    %s74 = sld [smem:[#allocation2 + $0x23]]
    %s75 = sld [smem:[#allocation2 + $0x24]]
    %s76 = sld [smem:[#allocation2 + $0x25]]
    %s77 = sld [smem:[#allocation2 + $0x26]]
    %s78 = sld [smem:[#allocation2 + $0x27]]
    %s79 = sld [smem:[#allocation2 + $0x28]]
    %s80 = sld [smem:[#allocation2 + $0x29]]
    %s81 = sld [smem:[#allocation2 + $0x2a]]
    %s82 = sld [smem:[#allocation2 + $0x2b]]
    %s83 = sld [smem:[#allocation2 + $0x2c]]
    %s84 = sld [smem:[#allocation2 + $0x2d]]
    %s85 = sld [smem:[#allocation2 + $0x2e]]
    %s86 = sld [smem:[#allocation2 + $0x2f]]
    %s87 = sld [smem:[#allocation2 + $0x30]]
    %s88 = sld [smem:[#allocation2 + $0x31]]
    %s89 = sld [smem:[#allocation2 + $0x32]]
    %s90 = sld [smem:[#allocation2 + $0x33]]
    %s91 = sld [smem:[#allocation2 + $0x34]]
    %s92 = sld [smem:[#allocation2 + $0x35]]
    %s93 = sld [smem:[#allocation2 + $0x36]]
    %s94 = sld [smem:[#allocation2 + $0x37]]
    %s95 = sld [smem:[#allocation2 + $0x38]]
    %s96 = sld [smem:[#allocation2 + $0x39]]
    %s97 = sld [smem:[#allocation2 + $0x3a]]
    %s98 = sld [smem:[#allocation2 + $0x3b]]
    %s99 = sld [smem:[#allocation4]]
    %s100 = sld [smem:[#allocation4 + $0x1]]
    %s101 = sld [smem:[#allocation4 + $0x2]]
    %s102 = sld [smem:[#allocation4 + $0x3]]
    %s103 = sld [smem:[#allocation4 + $0x4]]
    loop: start=0, step=1, limit=4
    $region22: #{tpu_custom_call.1} parent=1 // loop_pre_header
      _
    $region23: #{tpu_custom_call.1} parent=1 // loop_header
      %s105 = sphi 0, %s109
      %p106 = scmp.ge.s32.totalorder %s105, 4
    $region24: #{tpu_custom_call.1} parent=1 // loop_header_branch
      %108 = sbr.rel (%p106) target = $region28
    $region25: #{tpu_custom_call.1} parent=1 // loop_body
      %s110 = smul.u32 %s105, 168
      %s111 = scalar_lea.vmem %s0, %s110
      %v112 = vld [vmem:[%s111] sm:$0xff]
      %v113 = vld [vmem:[%s111 + $0x8] sm:$0xff]
      %v114 = vld [vmem:[%s111 + $0x10] sm:$0xff]
      %v115 = vld [vmem:[%s111 + $0x18] sm:$0xff]
      %v116 = vld [vmem:[%s111 + $0x20] sm:$0xff]
      %v117 = vld [vmem:[%s111 + $0x28] sm:$0xff]
      %v118 = vld [vmem:[%s111 + $0x30] sm:$0x1]
      %v119 = vstv %s39
      %v120 = vmul.f32 %v112, %v119
      %v121 = vmul.f32 %v113, %v119
      %v122 = vmul.f32 %v114, %v119
      %v123 = vmul.f32 %v115, %v119
      %v124 = vmul.f32 %v116, %v119
      %v125 = vmul.f32 %v117, %v119
      %v126 = vadd.f32 %v120, 0.0
      %v127 = vadd.f32 %v121, 0.0
      %v128 = vadd.f32 %v122, 0.0
      %v129 = vadd.f32 %v123, 0.0
      %v130 = vadd.f32 %v124, 0.0
      %v131 = vadd.f32 %v125, 0.0
      %v132 = vstv %s40
      %v133 = vmul.f32 %v112, %v132
      %v134 = vmul.f32 %v113, %v132
      %v135 = vmul.f32 %v114, %v132
      %v136 = vmul.f32 %v115, %v132
      %v137 = vmul.f32 %v116, %v132
      %v138 = vmul.f32 %v117, %v132
      %v139 = vadd.f32 %v133, 0.0
      %v140 = vadd.f32 %v134, 0.0
      %v141 = vadd.f32 %v135, 0.0
      %v142 = vadd.f32 %v136, 0.0
      %v143 = vadd.f32 %v137, 0.0
      %v144 = vadd.f32 %v138, 0.0
      %v145 = vstv %s41
      %v146 = vmul.f32 %v112, %v145
      %v147 = vmul.f32 %v113, %v145
      %v148 = vmul.f32 %v114, %v145
      %v149 = vmul.f32 %v115, %v145
      %v150 = vmul.f32 %v116, %v145
      %v151 = vmul.f32 %v117, %v145
      %v152 = vadd.f32 %v146, 0.0
      %v153 = vadd.f32 %v147, 0.0
      %v154 = vadd.f32 %v148, 0.0
      %v155 = vadd.f32 %v149, 0.0
      %v156 = vadd.f32 %v150, 0.0
      %v157 = vadd.f32 %v151, 0.0
      %v158 = vstv %s42
      %v159 = vmul.f32 %v112, %v158
      %v160 = vmul.f32 %v113, %v158
      %v161 = vmul.f32 %v114, %v158
      %v162 = vmul.f32 %v115, %v158
      %v163 = vmul.f32 %v116, %v158
      %v164 = vmul.f32 %v117, %v158
      %v165 = vadd.f32 %v159, 0.0
      %v166 = vadd.f32 %v160, 0.0
      %v167 = vadd.f32 %v161, 0.0
      %v168 = vadd.f32 %v162, 0.0
      %v169 = vadd.f32 %v163, 0.0
      %v170 = vadd.f32 %v164, 0.0
      %v171 = vstv %s43
      %v172 = vmul.f32 %v112, %v171
      %v173 = vmul.f32 %v113, %v171
      %v174 = vmul.f32 %v114, %v171
      %v175 = vmul.f32 %v115, %v171
      %v176 = vmul.f32 %v116, %v171
      %v177 = vmul.f32 %v117, %v171
      %v178 = vadd.f32 %v172, 0.0
      %v179 = vadd.f32 %v173, 0.0
      %v180 = vadd.f32 %v174, 0.0
      %v181 = vadd.f32 %v175, 0.0
      %v182 = vadd.f32 %v176, 0.0
      %v183 = vadd.f32 %v177, 0.0
      %v184 = vstv %s54
      %v185 = vmul.f32 %v112, %v184
      %v186 = vmul.f32 %v113, %v184
      %v187 = vmul.f32 %v114, %v184
      %v188 = vmul.f32 %v115, %v184
      %v189 = vmul.f32 %v116, %v184
      %v190 = vmul.f32 %v117, %v184
      %197 = vrot.lane.b32.xlu0 %v185, 127
      %v198 = vpop.permute.xlu0 %197
      %199 = vrot.lane.b32.xlu0 %v186, 127
      %v200 = vpop.permute.xlu0 %199
      %201 = vrot.lane.b32.xlu0 %v187, 127
      %v202 = vpop.permute.xlu0 %201
      %203 = vrot.lane.b32.xlu0 %v188, 127
      %v204 = vpop.permute.xlu0 %203
      %205 = vrot.lane.b32.xlu0 %v189, 127
      %v206 = vpop.permute.xlu0 %205
      %207 = vrot.lane.b32.xlu0 %v190, 127
      %v208 = vpop.permute.xlu0 %207
      %v215 = vadd.f32 %v126, %v198
      %v216 = vadd.f32 %v127, %v200
      %v217 = vadd.f32 %v128, %v202
      %v218 = vadd.f32 %v129, %v204
      %v219 = vadd.f32 %v130, %v206
      %v220 = vadd.f32 %v131, %v208
      %v221 = vstv %s55
      %v222 = vmul.f32 %v112, %v221
      %v223 = vmul.f32 %v113, %v221
      %v224 = vmul.f32 %v114, %v221
      %v225 = vmul.f32 %v115, %v221
      %v226 = vmul.f32 %v116, %v221
      %v227 = vmul.f32 %v117, %v221
      %234 = vrot.lane.b32.xlu0 %v222, 127
      %v235 = vpop.permute.xlu0 %234
      %236 = vrot.lane.b32.xlu0 %v223, 127
      %v237 = vpop.permute.xlu0 %236
      %238 = vrot.lane.b32.xlu0 %v224, 127
      %v239 = vpop.permute.xlu0 %238
      %240 = vrot.lane.b32.xlu0 %v225, 127
      %v241 = vpop.permute.xlu0 %240
      %242 = vrot.lane.b32.xlu0 %v226, 127
      %v243 = vpop.permute.xlu0 %242
      %244 = vrot.lane.b32.xlu0 %v227, 127
      %v245 = vpop.permute.xlu0 %244
      %v252 = vadd.f32 %v139, %v235
      %v253 = vadd.f32 %v140, %v237
      %v254 = vadd.f32 %v141, %v239
      %v255 = vadd.f32 %v142, %v241
      %v256 = vadd.f32 %v143, %v243
      %v257 = vadd.f32 %v144, %v245
      %v258 = vstv %s56
      %v259 = vmul.f32 %v112, %v258
      %v260 = vmul.f32 %v113, %v258
      %v261 = vmul.f32 %v114, %v258
      %v262 = vmul.f32 %v115, %v258
      %v263 = vmul.f32 %v116, %v258
      %v264 = vmul.f32 %v117, %v258
      %271 = vrot.lane.b32.xlu0 %v259, 127
      %v272 = vpop.permute.xlu0 %271
      %273 = vrot.lane.b32.xlu0 %v260, 127
      %v274 = vpop.permute.xlu0 %273
      %275 = vrot.lane.b32.xlu0 %v261, 127
      %v276 = vpop.permute.xlu0 %275
      %277 = vrot.lane.b32.xlu0 %v262, 127
      %v278 = vpop.permute.xlu0 %277
      %279 = vrot.lane.b32.xlu0 %v263, 127
      %v280 = vpop.permute.xlu0 %279
      %281 = vrot.lane.b32.xlu0 %v264, 127
      %v282 = vpop.permute.xlu0 %281
      %v289 = vadd.f32 %v152, %v272
      %v290 = vadd.f32 %v153, %v274
      %v291 = vadd.f32 %v154, %v276
      %v292 = vadd.f32 %v155, %v278
      %v293 = vadd.f32 %v156, %v280
      %v294 = vadd.f32 %v157, %v282
      %v295 = vstv %s57
      %v296 = vmul.f32 %v112, %v295
      %v297 = vmul.f32 %v113, %v295
      %v298 = vmul.f32 %v114, %v295
      %v299 = vmul.f32 %v115, %v295
      %v300 = vmul.f32 %v116, %v295
      %v301 = vmul.f32 %v117, %v295
      %308 = vrot.lane.b32.xlu0 %v296, 127
      %v309 = vpop.permute.xlu0 %308
      %310 = vrot.lane.b32.xlu0 %v297, 127
      %v311 = vpop.permute.xlu0 %310
      %312 = vrot.lane.b32.xlu0 %v298, 127
      %v313 = vpop.permute.xlu0 %312
      %314 = vrot.lane.b32.xlu0 %v299, 127
      %v315 = vpop.permute.xlu0 %314
      %316 = vrot.lane.b32.xlu0 %v300, 127
      %v317 = vpop.permute.xlu0 %316
      %318 = vrot.lane.b32.xlu0 %v301, 127
      %v319 = vpop.permute.xlu0 %318
      %v326 = vadd.f32 %v165, %v309
      %v327 = vadd.f32 %v166, %v311
      %v328 = vadd.f32 %v167, %v313
      %v329 = vadd.f32 %v168, %v315
      %v330 = vadd.f32 %v169, %v317
      %v331 = vadd.f32 %v170, %v319
      %v332 = vstv %s58
      %v333 = vmul.f32 %v112, %v332
      %v334 = vmul.f32 %v113, %v332
      %v335 = vmul.f32 %v114, %v332
      %v336 = vmul.f32 %v115, %v332
      %v337 = vmul.f32 %v116, %v332
      %v338 = vmul.f32 %v117, %v332
      %345 = vrot.lane.b32.xlu0 %v333, 127
      %v346 = vpop.permute.xlu0 %345
      %347 = vrot.lane.b32.xlu0 %v334, 127
      %v348 = vpop.permute.xlu0 %347
      %349 = vrot.lane.b32.xlu0 %v335, 127
      %v350 = vpop.permute.xlu0 %349
      %351 = vrot.lane.b32.xlu0 %v336, 127
      %v352 = vpop.permute.xlu0 %351
      %353 = vrot.lane.b32.xlu0 %v337, 127
      %v354 = vpop.permute.xlu0 %353
      %355 = vrot.lane.b32.xlu0 %v338, 127
      %v356 = vpop.permute.xlu0 %355
      %v363 = vadd.f32 %v178, %v346
      %v364 = vadd.f32 %v179, %v348
      %v365 = vadd.f32 %v180, %v350
      %v366 = vadd.f32 %v181, %v352
      %v367 = vadd.f32 %v182, %v354
      %v368 = vadd.f32 %v183, %v356
      %v369 = vstv %s69
      %v370 = vmul.f32 %v112, %v369
      %v371 = vmul.f32 %v113, %v369
      %v372 = vmul.f32 %v114, %v369
      %v373 = vmul.f32 %v115, %v369
      %v374 = vmul.f32 %v116, %v369
      %v375 = vmul.f32 %v117, %v369
      %v376 = vmul.f32 %v118, %v369
      %vm384 = vcmask 1046528
      %v385 = vrot.slane %v370, 1
      %v386 = vrot.slane %v371, 1
      %v387 = vsel %vm384, %v385, %v386
      %v388 = vrot.slane %v372, 1
      %v389 = vsel %vm384, %v386, %v388
      %v390 = vrot.slane %v373, 1
      %v391 = vsel %vm384, %v388, %v390
      %v392 = vrot.slane %v374, 1
      %v393 = vsel %vm384, %v390, %v392
      %v394 = vrot.slane %v375, 1
      %v395 = vsel %vm384, %v392, %v394
      %v396 = vrot.slane %v376, 1
      %v397 = vsel %vm384, %v394, %v396
      %v404 = vadd.f32 %v215, %v387
      %v405 = vadd.f32 %v216, %v389
      %v406 = vadd.f32 %v217, %v391
      %v407 = vadd.f32 %v218, %v393
      %v408 = vadd.f32 %v219, %v395
      %v409 = vadd.f32 %v220, %v397
      %v410 = vstv %s70
      %v411 = vmul.f32 %v112, %v410
      %v412 = vmul.f32 %v113, %v410
      %v413 = vmul.f32 %v114, %v410
      %v414 = vmul.f32 %v115, %v410
      %v415 = vmul.f32 %v116, %v410
      %v416 = vmul.f32 %v117, %v410
      %v417 = vmul.f32 %v118, %v410
      %v425 = vrot.slane %v411, 1
      %v426 = vrot.slane %v412, 1
      %v427 = vsel %vm384, %v425, %v426
      %v428 = vrot.slane %v413, 1
      %v429 = vsel %vm384, %v426, %v428
      %v430 = vrot.slane %v414, 1
      %v431 = vsel %vm384, %v428, %v430
      %v432 = vrot.slane %v415, 1
      %v433 = vsel %vm384, %v430, %v432
      %v434 = vrot.slane %v416, 1
      %v435 = vsel %vm384, %v432, %v434
      %v436 = vrot.slane %v417, 1
      %v437 = vsel %vm384, %v434, %v436
      %v444 = vadd.f32 %v252, %v427
      %v445 = vadd.f32 %v253, %v429
      %v446 = vadd.f32 %v254, %v431
      %v447 = vadd.f32 %v255, %v433
      %v448 = vadd.f32 %v256, %v435
      %v449 = vadd.f32 %v257, %v437
      %v450 = vstv %s71
      %v451 = vmul.f32 %v112, %v450
      %v452 = vmul.f32 %v113, %v450
      %v453 = vmul.f32 %v114, %v450
      %v454 = vmul.f32 %v115, %v450
      %v455 = vmul.f32 %v116, %v450
      %v456 = vmul.f32 %v117, %v450
      %v457 = vmul.f32 %v118, %v450
      %v465 = vrot.slane %v451, 1
      %v466 = vrot.slane %v452, 1
      %v467 = vsel %vm384, %v465, %v466
      %v468 = vrot.slane %v453, 1
      %v469 = vsel %vm384, %v466, %v468
      %v470 = vrot.slane %v454, 1
      %v471 = vsel %vm384, %v468, %v470
      %v472 = vrot.slane %v455, 1
      %v473 = vsel %vm384, %v470, %v472
      %v474 = vrot.slane %v456, 1
      %v475 = vsel %vm384, %v472, %v474
      %v476 = vrot.slane %v457, 1
      %v477 = vsel %vm384, %v474, %v476
      %v484 = vadd.f32 %v289, %v467
      %v485 = vadd.f32 %v290, %v469
      %v486 = vadd.f32 %v291, %v471
      %v487 = vadd.f32 %v292, %v473
      %v488 = vadd.f32 %v293, %v475
      %v489 = vadd.f32 %v294, %v477
      %v490 = vstv %s72
      %v491 = vmul.f32 %v112, %v490
      %v492 = vmul.f32 %v113, %v490
      %v493 = vmul.f32 %v114, %v490
      %v494 = vmul.f32 %v115, %v490
      %v495 = vmul.f32 %v116, %v490
      %v496 = vmul.f32 %v117, %v490
      %v497 = vmul.f32 %v118, %v490
      %v505 = vrot.slane %v491, 1
      %v506 = vrot.slane %v492, 1
      %v507 = vsel %vm384, %v505, %v506
      %v508 = vrot.slane %v493, 1
      %v509 = vsel %vm384, %v506, %v508
      %v510 = vrot.slane %v494, 1
      %v511 = vsel %vm384, %v508, %v510
      %v512 = vrot.slane %v495, 1
      %v513 = vsel %vm384, %v510, %v512
      %v514 = vrot.slane %v496, 1
      %v515 = vsel %vm384, %v512, %v514
      %v516 = vrot.slane %v497, 1
      %v517 = vsel %vm384, %v514, %v516
      %v524 = vadd.f32 %v326, %v507
      %v525 = vadd.f32 %v327, %v509
      %v526 = vadd.f32 %v328, %v511
      %v527 = vadd.f32 %v329, %v513
      %v528 = vadd.f32 %v330, %v515
      %v529 = vadd.f32 %v331, %v517
      %v530 = vstv %s73
      %v531 = vmul.f32 %v112, %v530
      %v532 = vmul.f32 %v113, %v530
      %v533 = vmul.f32 %v114, %v530
      %v534 = vmul.f32 %v115, %v530
      %v535 = vmul.f32 %v116, %v530
      %v536 = vmul.f32 %v117, %v530
      %v537 = vmul.f32 %v118, %v530
      %v545 = vrot.slane %v531, 1
      %v546 = vrot.slane %v532, 1
      %v547 = vsel %vm384, %v545, %v546
      %v548 = vrot.slane %v533, 1
      %v549 = vsel %vm384, %v546, %v548
      %v550 = vrot.slane %v534, 1
      %v551 = vsel %vm384, %v548, %v550
      %v552 = vrot.slane %v535, 1
      %v553 = vsel %vm384, %v550, %v552
      %v554 = vrot.slane %v536, 1
      %v555 = vsel %vm384, %v552, %v554
      %v556 = vrot.slane %v537, 1
      %v557 = vsel %vm384, %v554, %v556
      %v564 = vadd.f32 %v363, %v547
      %v565 = vadd.f32 %v364, %v549
      %v566 = vadd.f32 %v365, %v551
      %v567 = vadd.f32 %v366, %v553
      %v568 = vadd.f32 %v367, %v555
      %v569 = vadd.f32 %v368, %v557
      %v570 = vstv %s84
      %v571 = vmul.f32 %v112, %v570
      %v572 = vmul.f32 %v113, %v570
      %v573 = vmul.f32 %v114, %v570
      %v574 = vmul.f32 %v115, %v570
      %v575 = vmul.f32 %v116, %v570
      %v576 = vmul.f32 %v117, %v570
      %v577 = vmul.f32 %v118, %v570
      %v585 = vrot.slane %v571, 1
      %v586 = vrot.slane %v572, 1
      %v587 = vsel %vm384, %v585, %v586
      %v588 = vrot.slane %v573, 1
      %v589 = vsel %vm384, %v586, %v588
      %v590 = vrot.slane %v574, 1
      %v591 = vsel %vm384, %v588, %v590
      %v592 = vrot.slane %v575, 1
      %v593 = vsel %vm384, %v590, %v592
      %v594 = vrot.slane %v576, 1
      %v595 = vsel %vm384, %v592, %v594
      %v596 = vrot.slane %v577, 1
      %v597 = vsel %vm384, %v594, %v596
      %598 = vrot.lane.b32.xlu0 %v587, 127
      %v599 = vpop.permute.xlu0 %598
      %600 = vrot.lane.b32.xlu0 %v589, 127
      %v601 = vpop.permute.xlu0 %600
      %602 = vrot.lane.b32.xlu0 %v591, 127
      %v603 = vpop.permute.xlu0 %602
      %604 = vrot.lane.b32.xlu0 %v593, 127
      %v605 = vpop.permute.xlu0 %604
      %606 = vrot.lane.b32.xlu0 %v595, 127
      %v607 = vpop.permute.xlu0 %606
      %608 = vrot.lane.b32.xlu0 %v597, 127
      %v609 = vpop.permute.xlu0 %608
      %v616 = vadd.f32 %v404, %v599
      %v617 = vadd.f32 %v405, %v601
      %v618 = vadd.f32 %v406, %v603
      %v619 = vadd.f32 %v407, %v605
      %v620 = vadd.f32 %v408, %v607
      %v621 = vadd.f32 %v409, %v609
      %v622 = vstv %s85
      %v623 = vmul.f32 %v112, %v622
      %v624 = vmul.f32 %v113, %v622
      %v625 = vmul.f32 %v114, %v622
      %v626 = vmul.f32 %v115, %v622
      %v627 = vmul.f32 %v116, %v622
      %v628 = vmul.f32 %v117, %v622
      %v629 = vmul.f32 %v118, %v622
      %v637 = vrot.slane %v623, 1
      %v638 = vrot.slane %v624, 1
      %v639 = vsel %vm384, %v637, %v638
      %v640 = vrot.slane %v625, 1
      %v641 = vsel %vm384, %v638, %v640
      %v642 = vrot.slane %v626, 1
      %v643 = vsel %vm384, %v640, %v642
      %v644 = vrot.slane %v627, 1
      %v645 = vsel %vm384, %v642, %v644
      %v646 = vrot.slane %v628, 1
      %v647 = vsel %vm384, %v644, %v646
      %v648 = vrot.slane %v629, 1
      %v649 = vsel %vm384, %v646, %v648
      %650 = vrot.lane.b32.xlu0 %v639, 127
      %v651 = vpop.permute.xlu0 %650
      %652 = vrot.lane.b32.xlu0 %v641, 127
      %v653 = vpop.permute.xlu0 %652
      %654 = vrot.lane.b32.xlu0 %v643, 127
      %v655 = vpop.permute.xlu0 %654
      %656 = vrot.lane.b32.xlu0 %v645, 127
      %v657 = vpop.permute.xlu0 %656
      %658 = vrot.lane.b32.xlu0 %v647, 127
      %v659 = vpop.permute.xlu0 %658
      %660 = vrot.lane.b32.xlu0 %v649, 127
      %v661 = vpop.permute.xlu0 %660
      %v668 = vadd.f32 %v444, %v651
      %v669 = vadd.f32 %v445, %v653
      %v670 = vadd.f32 %v446, %v655
      %v671 = vadd.f32 %v447, %v657
      %v672 = vadd.f32 %v448, %v659
      %v673 = vadd.f32 %v449, %v661
      %v674 = vstv %s86
      %v675 = vmul.f32 %v112, %v674
      %v676 = vmul.f32 %v113, %v674
      %v677 = vmul.f32 %v114, %v674
      %v678 = vmul.f32 %v115, %v674
      %v679 = vmul.f32 %v116, %v674
      %v680 = vmul.f32 %v117, %v674
      %v681 = vmul.f32 %v118, %v674
      %v689 = vrot.slane %v675, 1
      %v690 = vrot.slane %v676, 1
      %v691 = vsel %vm384, %v689, %v690
      %v692 = vrot.slane %v677, 1
      %v693 = vsel %vm384, %v690, %v692
      %v694 = vrot.slane %v678, 1
      %v695 = vsel %vm384, %v692, %v694
      %v696 = vrot.slane %v679, 1
      %v697 = vsel %vm384, %v694, %v696
      %v698 = vrot.slane %v680, 1
      %v699 = vsel %vm384, %v696, %v698
      %v700 = vrot.slane %v681, 1
      %v701 = vsel %vm384, %v698, %v700
      %702 = vrot.lane.b32.xlu0 %v691, 127
      %v703 = vpop.permute.xlu0 %702
      %704 = vrot.lane.b32.xlu0 %v693, 127
      %v705 = vpop.permute.xlu0 %704
      %706 = vrot.lane.b32.xlu0 %v695, 127
      %v707 = vpop.permute.xlu0 %706
      %708 = vrot.lane.b32.xlu0 %v697, 127
      %v709 = vpop.permute.xlu0 %708
      %710 = vrot.lane.b32.xlu0 %v699, 127
      %v711 = vpop.permute.xlu0 %710
      %712 = vrot.lane.b32.xlu0 %v701, 127
      %v713 = vpop.permute.xlu0 %712
      %v720 = vadd.f32 %v484, %v703
      %v721 = vadd.f32 %v485, %v705
      %v722 = vadd.f32 %v486, %v707
      %v723 = vadd.f32 %v487, %v709
      %v724 = vadd.f32 %v488, %v711
      %v725 = vadd.f32 %v489, %v713
      %v726 = vstv %s87
      %v727 = vmul.f32 %v112, %v726
      %v728 = vmul.f32 %v113, %v726
      %v729 = vmul.f32 %v114, %v726
      %v730 = vmul.f32 %v115, %v726
      %v731 = vmul.f32 %v116, %v726
      %v732 = vmul.f32 %v117, %v726
      %v733 = vmul.f32 %v118, %v726
      %v741 = vrot.slane %v727, 1
      %v742 = vrot.slane %v728, 1
      %v743 = vsel %vm384, %v741, %v742
      %v744 = vrot.slane %v729, 1
      %v745 = vsel %vm384, %v742, %v744
      %v746 = vrot.slane %v730, 1
      %v747 = vsel %vm384, %v744, %v746
      %v748 = vrot.slane %v731, 1
      %v749 = vsel %vm384, %v746, %v748
      %v750 = vrot.slane %v732, 1
      %v751 = vsel %vm384, %v748, %v750
      %v752 = vrot.slane %v733, 1
      %v753 = vsel %vm384, %v750, %v752
      %754 = vrot.lane.b32.xlu0 %v743, 127
      %v755 = vpop.permute.xlu0 %754
      %756 = vrot.lane.b32.xlu0 %v745, 127
      %v757 = vpop.permute.xlu0 %756
      %758 = vrot.lane.b32.xlu0 %v747, 127
      %v759 = vpop.permute.xlu0 %758
      %760 = vrot.lane.b32.xlu0 %v749, 127
      %v761 = vpop.permute.xlu0 %760
      %762 = vrot.lane.b32.xlu0 %v751, 127
      %v763 = vpop.permute.xlu0 %762
      %764 = vrot.lane.b32.xlu0 %v753, 127
      %v765 = vpop.permute.xlu0 %764
      %v772 = vadd.f32 %v524, %v755
      %v773 = vadd.f32 %v525, %v757
      %v774 = vadd.f32 %v526, %v759
      %v775 = vadd.f32 %v527, %v761
      %v776 = vadd.f32 %v528, %v763
      %v777 = vadd.f32 %v529, %v765
      %v778 = vstv %s88
      %v779 = vmul.f32 %v112, %v778
      %v780 = vmul.f32 %v113, %v778
      %v781 = vmul.f32 %v114, %v778
      %v782 = vmul.f32 %v115, %v778
      %v783 = vmul.f32 %v116, %v778
      %v784 = vmul.f32 %v117, %v778
      %v785 = vmul.f32 %v118, %v778
      %v793 = vrot.slane %v779, 1
      %v794 = vrot.slane %v780, 1
      %v795 = vsel %vm384, %v793, %v794
      %v796 = vrot.slane %v781, 1
      %v797 = vsel %vm384, %v794, %v796
      %v798 = vrot.slane %v782, 1
      %v799 = vsel %vm384, %v796, %v798
      %v800 = vrot.slane %v783, 1
      %v801 = vsel %vm384, %v798, %v800
      %v802 = vrot.slane %v784, 1
      %v803 = vsel %vm384, %v800, %v802
      %v804 = vrot.slane %v785, 1
      %v805 = vsel %vm384, %v802, %v804
      %806 = vrot.lane.b32.xlu0 %v795, 127
      %v807 = vpop.permute.xlu0 %806
      %808 = vrot.lane.b32.xlu0 %v797, 127
      %v809 = vpop.permute.xlu0 %808
      %810 = vrot.lane.b32.xlu0 %v799, 127
      %v811 = vpop.permute.xlu0 %810
      %812 = vrot.lane.b32.xlu0 %v801, 127
      %v813 = vpop.permute.xlu0 %812
      %814 = vrot.lane.b32.xlu0 %v803, 127
      %v815 = vpop.permute.xlu0 %814
      %816 = vrot.lane.b32.xlu0 %v805, 127
      %v817 = vpop.permute.xlu0 %816
      %v824 = vadd.f32 %v564, %v807
      %v825 = vadd.f32 %v565, %v809
      %v826 = vadd.f32 %v566, %v811
      %v827 = vadd.f32 %v567, %v813
      %v828 = vadd.f32 %v568, %v815
      %v829 = vadd.f32 %v569, %v817
      %s830 = sadd.s32 56, %s110
      %s831 = scalar_lea.vmem %s0, %s830
      %v832 = vld [vmem:[%s831] sm:$0xff]
      %v833 = vld [vmem:[%s831 + $0x8] sm:$0xff]
      %v834 = vld [vmem:[%s831 + $0x10] sm:$0xff]
      %v835 = vld [vmem:[%s831 + $0x18] sm:$0xff]
      %v836 = vld [vmem:[%s831 + $0x20] sm:$0xff]
      %v837 = vld [vmem:[%s831 + $0x28] sm:$0xff]
      %v838 = vld [vmem:[%s831 + $0x30] sm:$0x1]
      %v839 = vstv %s44
      %v840 = vmul.f32 %v832, %v839
      %v841 = vmul.f32 %v833, %v839
      %v842 = vmul.f32 %v834, %v839
      %v843 = vmul.f32 %v835, %v839
      %v844 = vmul.f32 %v836, %v839
      %v845 = vmul.f32 %v837, %v839
      %v846 = vadd.f32 %v616, %v840
      %v847 = vadd.f32 %v617, %v841
      %v848 = vadd.f32 %v618, %v842
      %v849 = vadd.f32 %v619, %v843
      %v850 = vadd.f32 %v620, %v844
      %v851 = vadd.f32 %v621, %v845
      %v852 = vstv %s45
      %v853 = vmul.f32 %v832, %v852
      %v854 = vmul.f32 %v833, %v852
      %v855 = vmul.f32 %v834, %v852
      %v856 = vmul.f32 %v835, %v852
      %v857 = vmul.f32 %v836, %v852
      %v858 = vmul.f32 %v837, %v852
      %v859 = vadd.f32 %v668, %v853
      %v860 = vadd.f32 %v669, %v854
      %v861 = vadd.f32 %v670, %v855
      %v862 = vadd.f32 %v671, %v856
      %v863 = vadd.f32 %v672, %v857
      %v864 = vadd.f32 %v673, %v858
      %v865 = vstv %s46
      %v866 = vmul.f32 %v832, %v865
      %v867 = vmul.f32 %v833, %v865
      %v868 = vmul.f32 %v834, %v865
      %v869 = vmul.f32 %v835, %v865
      %v870 = vmul.f32 %v836, %v865
      %v871 = vmul.f32 %v837, %v865
      %v872 = vadd.f32 %v720, %v866
      %v873 = vadd.f32 %v721, %v867
      %v874 = vadd.f32 %v722, %v868
      %v875 = vadd.f32 %v723, %v869
      %v876 = vadd.f32 %v724, %v870
      %v877 = vadd.f32 %v725, %v871
      %v878 = vstv %s47
      %v879 = vmul.f32 %v832, %v878
      %v880 = vmul.f32 %v833, %v878
      %v881 = vmul.f32 %v834, %v878
      %v882 = vmul.f32 %v835, %v878
      %v883 = vmul.f32 %v836, %v878
      %v884 = vmul.f32 %v837, %v878
      %v885 = vadd.f32 %v772, %v879
      %v886 = vadd.f32 %v773, %v880
      %v887 = vadd.f32 %v774, %v881
      %v888 = vadd.f32 %v775, %v882
      %v889 = vadd.f32 %v776, %v883
      %v890 = vadd.f32 %v777, %v884
      %v891 = vstv %s48
      %v892 = vmul.f32 %v832, %v891
      %v893 = vmul.f32 %v833, %v891
      %v894 = vmul.f32 %v834, %v891
      %v895 = vmul.f32 %v835, %v891
      %v896 = vmul.f32 %v836, %v891
      %v897 = vmul.f32 %v837, %v891
      %v898 = vadd.f32 %v824, %v892
      %v899 = vadd.f32 %v825, %v893
      %v900 = vadd.f32 %v826, %v894
      %v901 = vadd.f32 %v827, %v895
      %v902 = vadd.f32 %v828, %v896
      %v903 = vadd.f32 %v829, %v897
      %v904 = vstv %s59
      %v905 = vmul.f32 %v832, %v904
      %v906 = vmul.f32 %v833, %v904
      %v907 = vmul.f32 %v834, %v904
      %v908 = vmul.f32 %v835, %v904
      %v909 = vmul.f32 %v836, %v904
      %v910 = vmul.f32 %v837, %v904
      %917 = vrot.lane.b32.xlu0 %v905, 127
      %v918 = vpop.permute.xlu0 %917
      %919 = vrot.lane.b32.xlu0 %v906, 127
      %v920 = vpop.permute.xlu0 %919
      %921 = vrot.lane.b32.xlu0 %v907, 127
      %v922 = vpop.permute.xlu0 %921
      %923 = vrot.lane.b32.xlu0 %v908, 127
      %v924 = vpop.permute.xlu0 %923
      %925 = vrot.lane.b32.xlu0 %v909, 127
      %v926 = vpop.permute.xlu0 %925
      %927 = vrot.lane.b32.xlu0 %v910, 127
      %v928 = vpop.permute.xlu0 %927
      %v935 = vadd.f32 %v846, %v918
      %v936 = vadd.f32 %v847, %v920
      %v937 = vadd.f32 %v848, %v922
      %v938 = vadd.f32 %v849, %v924
      %v939 = vadd.f32 %v850, %v926
      %v940 = vadd.f32 %v851, %v928
      %v941 = vstv %s60
      %v942 = vmul.f32 %v832, %v941
      %v943 = vmul.f32 %v833, %v941
      %v944 = vmul.f32 %v834, %v941
      %v945 = vmul.f32 %v835, %v941
      %v946 = vmul.f32 %v836, %v941
      %v947 = vmul.f32 %v837, %v941
      %954 = vrot.lane.b32.xlu0 %v942, 127
      %v955 = vpop.permute.xlu0 %954
      %956 = vrot.lane.b32.xlu0 %v943, 127
      %v957 = vpop.permute.xlu0 %956
      %958 = vrot.lane.b32.xlu0 %v944, 127
      %v959 = vpop.permute.xlu0 %958
      %960 = vrot.lane.b32.xlu0 %v945, 127
      %v961 = vpop.permute.xlu0 %960
      %962 = vrot.lane.b32.xlu0 %v946, 127
      %v963 = vpop.permute.xlu0 %962
      %964 = vrot.lane.b32.xlu0 %v947, 127
      %v965 = vpop.permute.xlu0 %964
      %v972 = vadd.f32 %v859, %v955
      %v973 = vadd.f32 %v860, %v957
      %v974 = vadd.f32 %v861, %v959
      %v975 = vadd.f32 %v862, %v961
      %v976 = vadd.f32 %v863, %v963
      %v977 = vadd.f32 %v864, %v965
      %v978 = vstv %s61
      %v979 = vmul.f32 %v832, %v978
      %v980 = vmul.f32 %v833, %v978
      %v981 = vmul.f32 %v834, %v978
      %v982 = vmul.f32 %v835, %v978
      %v983 = vmul.f32 %v836, %v978
      %v984 = vmul.f32 %v837, %v978
      %991 = vrot.lane.b32.xlu0 %v979, 127
      %v992 = vpop.permute.xlu0 %991
      %993 = vrot.lane.b32.xlu0 %v980, 127
      %v994 = vpop.permute.xlu0 %993
      %995 = vrot.lane.b32.xlu0 %v981, 127
      %v996 = vpop.permute.xlu0 %995
      %997 = vrot.lane.b32.xlu0 %v982, 127
      %v998 = vpop.permute.xlu0 %997
      %999 = vrot.lane.b32.xlu0 %v983, 127
      %v1000 = vpop.permute.xlu0 %999
      %1001 = vrot.lane.b32.xlu0 %v984, 127
      %v1002 = vpop.permute.xlu0 %1001
      %v1009 = vadd.f32 %v872, %v992
      %v1010 = vadd.f32 %v873, %v994
      %v1011 = vadd.f32 %v874, %v996
      %v1012 = vadd.f32 %v875, %v998
      %v1013 = vadd.f32 %v876, %v1000
      %v1014 = vadd.f32 %v877, %v1002
      %v1015 = vstv %s62
      %v1016 = vmul.f32 %v832, %v1015
      %v1017 = vmul.f32 %v833, %v1015
      %v1018 = vmul.f32 %v834, %v1015
      %v1019 = vmul.f32 %v835, %v1015
      %v1020 = vmul.f32 %v836, %v1015
      %v1021 = vmul.f32 %v837, %v1015
      %1028 = vrot.lane.b32.xlu0 %v1016, 127
      %v1029 = vpop.permute.xlu0 %1028
      %1030 = vrot.lane.b32.xlu0 %v1017, 127
      %v1031 = vpop.permute.xlu0 %1030
      %1032 = vrot.lane.b32.xlu0 %v1018, 127
      %v1033 = vpop.permute.xlu0 %1032
      %1034 = vrot.lane.b32.xlu0 %v1019, 127
      %v1035 = vpop.permute.xlu0 %1034
      %1036 = vrot.lane.b32.xlu0 %v1020, 127
      %v1037 = vpop.permute.xlu0 %1036
      %1038 = vrot.lane.b32.xlu0 %v1021, 127
      %v1039 = vpop.permute.xlu0 %1038
      %v1046 = vadd.f32 %v885, %v1029
      %v1047 = vadd.f32 %v886, %v1031
      %v1048 = vadd.f32 %v887, %v1033
      %v1049 = vadd.f32 %v888, %v1035
      %v1050 = vadd.f32 %v889, %v1037
      %v1051 = vadd.f32 %v890, %v1039
      %v1052 = vstv %s63
      %v1053 = vmul.f32 %v832, %v1052
      %v1054 = vmul.f32 %v833, %v1052
      %v1055 = vmul.f32 %v834, %v1052
      %v1056 = vmul.f32 %v835, %v1052
      %v1057 = vmul.f32 %v836, %v1052
      %v1058 = vmul.f32 %v837, %v1052
      %1065 = vrot.lane.b32.xlu0 %v1053, 127
      %v1066 = vpop.permute.xlu0 %1065
      %1067 = vrot.lane.b32.xlu0 %v1054, 127
      %v1068 = vpop.permute.xlu0 %1067
      %1069 = vrot.lane.b32.xlu0 %v1055, 127
      %v1070 = vpop.permute.xlu0 %1069
      %1071 = vrot.lane.b32.xlu0 %v1056, 127
      %v1072 = vpop.permute.xlu0 %1071
      %1073 = vrot.lane.b32.xlu0 %v1057, 127
      %v1074 = vpop.permute.xlu0 %1073
      %1075 = vrot.lane.b32.xlu0 %v1058, 127
      %v1076 = vpop.permute.xlu0 %1075
      %v1083 = vadd.f32 %v898, %v1066
      %v1084 = vadd.f32 %v899, %v1068
      %v1085 = vadd.f32 %v900, %v1070
      %v1086 = vadd.f32 %v901, %v1072
      %v1087 = vadd.f32 %v902, %v1074
      %v1088 = vadd.f32 %v903, %v1076
      %v1089 = vstv %s74
      %v1090 = vmul.f32 %v832, %v1089
      %v1091 = vmul.f32 %v833, %v1089
      %v1092 = vmul.f32 %v834, %v1089
      %v1093 = vmul.f32 %v835, %v1089
      %v1094 = vmul.f32 %v836, %v1089
      %v1095 = vmul.f32 %v837, %v1089
      %v1096 = vmul.f32 %v838, %v1089
      %v1104 = vrot.slane %v1090, 1
      %v1105 = vrot.slane %v1091, 1
      %v1106 = vsel %vm384, %v1104, %v1105
      %v1107 = vrot.slane %v1092, 1
      %v1108 = vsel %vm384, %v1105, %v1107
      %v1109 = vrot.slane %v1093, 1
      %v1110 = vsel %vm384, %v1107, %v1109
      %v1111 = vrot.slane %v1094, 1
      %v1112 = vsel %vm384, %v1109, %v1111
      %v1113 = vrot.slane %v1095, 1
      %v1114 = vsel %vm384, %v1111, %v1113
      %v1115 = vrot.slane %v1096, 1
      %v1116 = vsel %vm384, %v1113, %v1115
      %v1123 = vadd.f32 %v935, %v1106
      %v1124 = vadd.f32 %v936, %v1108
      %v1125 = vadd.f32 %v937, %v1110
      %v1126 = vadd.f32 %v938, %v1112
      %v1127 = vadd.f32 %v939, %v1114
      %v1128 = vadd.f32 %v940, %v1116
      %v1129 = vstv %s75
      %v1130 = vmul.f32 %v832, %v1129
      %v1131 = vmul.f32 %v833, %v1129
      %v1132 = vmul.f32 %v834, %v1129
      %v1133 = vmul.f32 %v835, %v1129
      %v1134 = vmul.f32 %v836, %v1129
      %v1135 = vmul.f32 %v837, %v1129
      %v1136 = vmul.f32 %v838, %v1129
      %v1144 = vrot.slane %v1130, 1
      %v1145 = vrot.slane %v1131, 1
      %v1146 = vsel %vm384, %v1144, %v1145
      %v1147 = vrot.slane %v1132, 1
      %v1148 = vsel %vm384, %v1145, %v1147
      %v1149 = vrot.slane %v1133, 1
      %v1150 = vsel %vm384, %v1147, %v1149
      %v1151 = vrot.slane %v1134, 1
      %v1152 = vsel %vm384, %v1149, %v1151
      %v1153 = vrot.slane %v1135, 1
      %v1154 = vsel %vm384, %v1151, %v1153
      %v1155 = vrot.slane %v1136, 1
      %v1156 = vsel %vm384, %v1153, %v1155
      %v1163 = vadd.f32 %v972, %v1146
      %v1164 = vadd.f32 %v973, %v1148
      %v1165 = vadd.f32 %v974, %v1150
      %v1166 = vadd.f32 %v975, %v1152
      %v1167 = vadd.f32 %v976, %v1154
      %v1168 = vadd.f32 %v977, %v1156
      %v1169 = vstv %s76
      %v1170 = vmul.f32 %v832, %v1169
      %v1171 = vmul.f32 %v833, %v1169
      %v1172 = vmul.f32 %v834, %v1169
      %v1173 = vmul.f32 %v835, %v1169
      %v1174 = vmul.f32 %v836, %v1169
      %v1175 = vmul.f32 %v837, %v1169
      %v1176 = vmul.f32 %v838, %v1169
      %v1184 = vrot.slane %v1170, 1
      %v1185 = vrot.slane %v1171, 1
      %v1186 = vsel %vm384, %v1184, %v1185
      %v1187 = vrot.slane %v1172, 1
      %v1188 = vsel %vm384, %v1185, %v1187
      %v1189 = vrot.slane %v1173, 1
      %v1190 = vsel %vm384, %v1187, %v1189
      %v1191 = vrot.slane %v1174, 1
      %v1192 = vsel %vm384, %v1189, %v1191
      %v1193 = vrot.slane %v1175, 1
      %v1194 = vsel %vm384, %v1191, %v1193
      %v1195 = vrot.slane %v1176, 1
      %v1196 = vsel %vm384, %v1193, %v1195
      %v1203 = vadd.f32 %v1009, %v1186
      %v1204 = vadd.f32 %v1010, %v1188
      %v1205 = vadd.f32 %v1011, %v1190
      %v1206 = vadd.f32 %v1012, %v1192
      %v1207 = vadd.f32 %v1013, %v1194
      %v1208 = vadd.f32 %v1014, %v1196
      %v1209 = vstv %s77
      %v1210 = vmul.f32 %v832, %v1209
      %v1211 = vmul.f32 %v833, %v1209
      %v1212 = vmul.f32 %v834, %v1209
      %v1213 = vmul.f32 %v835, %v1209
      %v1214 = vmul.f32 %v836, %v1209
      %v1215 = vmul.f32 %v837, %v1209
      %v1216 = vmul.f32 %v838, %v1209
      %v1224 = vrot.slane %v1210, 1
      %v1225 = vrot.slane %v1211, 1
      %v1226 = vsel %vm384, %v1224, %v1225
      %v1227 = vrot.slane %v1212, 1
      %v1228 = vsel %vm384, %v1225, %v1227
      %v1229 = vrot.slane %v1213, 1
      %v1230 = vsel %vm384, %v1227, %v1229
      %v1231 = vrot.slane %v1214, 1
      %v1232 = vsel %vm384, %v1229, %v1231
      %v1233 = vrot.slane %v1215, 1
      %v1234 = vsel %vm384, %v1231, %v1233
      %v1235 = vrot.slane %v1216, 1
      %v1236 = vsel %vm384, %v1233, %v1235
      %v1243 = vadd.f32 %v1046, %v1226
      %v1244 = vadd.f32 %v1047, %v1228
      %v1245 = vadd.f32 %v1048, %v1230
      %v1246 = vadd.f32 %v1049, %v1232
      %v1247 = vadd.f32 %v1050, %v1234
      %v1248 = vadd.f32 %v1051, %v1236
      %v1249 = vstv %s78
      %v1250 = vmul.f32 %v832, %v1249
      %v1251 = vmul.f32 %v833, %v1249
      %v1252 = vmul.f32 %v834, %v1249
      %v1253 = vmul.f32 %v835, %v1249
      %v1254 = vmul.f32 %v836, %v1249
      %v1255 = vmul.f32 %v837, %v1249
      %v1256 = vmul.f32 %v838, %v1249
      %v1264 = vrot.slane %v1250, 1
      %v1265 = vrot.slane %v1251, 1
      %v1266 = vsel %vm384, %v1264, %v1265
      %v1267 = vrot.slane %v1252, 1
      %v1268 = vsel %vm384, %v1265, %v1267
      %v1269 = vrot.slane %v1253, 1
      %v1270 = vsel %vm384, %v1267, %v1269
      %v1271 = vrot.slane %v1254, 1
      %v1272 = vsel %vm384, %v1269, %v1271
      %v1273 = vrot.slane %v1255, 1
      %v1274 = vsel %vm384, %v1271, %v1273
      %v1275 = vrot.slane %v1256, 1
      %v1276 = vsel %vm384, %v1273, %v1275
      %v1283 = vadd.f32 %v1083, %v1266
      %v1284 = vadd.f32 %v1084, %v1268
      %v1285 = vadd.f32 %v1085, %v1270
      %v1286 = vadd.f32 %v1086, %v1272
      %v1287 = vadd.f32 %v1087, %v1274
      %v1288 = vadd.f32 %v1088, %v1276
      %v1289 = vstv %s89
      %v1290 = vmul.f32 %v832, %v1289
      %v1291 = vmul.f32 %v833, %v1289
      %v1292 = vmul.f32 %v834, %v1289
      %v1293 = vmul.f32 %v835, %v1289
      %v1294 = vmul.f32 %v836, %v1289
      %v1295 = vmul.f32 %v837, %v1289
      %v1296 = vmul.f32 %v838, %v1289
      %v1304 = vrot.slane %v1290, 1
      %v1305 = vrot.slane %v1291, 1
      %v1306 = vsel %vm384, %v1304, %v1305
      %v1307 = vrot.slane %v1292, 1
      %v1308 = vsel %vm384, %v1305, %v1307
      %v1309 = vrot.slane %v1293, 1
      %v1310 = vsel %vm384, %v1307, %v1309
      %v1311 = vrot.slane %v1294, 1
      %v1312 = vsel %vm384, %v1309, %v1311
      %v1313 = vrot.slane %v1295, 1
      %v1314 = vsel %vm384, %v1311, %v1313
      %v1315 = vrot.slane %v1296, 1
      %v1316 = vsel %vm384, %v1313, %v1315
      %1317 = vrot.lane.b32.xlu0 %v1306, 127
      %v1318 = vpop.permute.xlu0 %1317
      %1319 = vrot.lane.b32.xlu0 %v1308, 127
      %v1320 = vpop.permute.xlu0 %1319
      %1321 = vrot.lane.b32.xlu0 %v1310, 127
      %v1322 = vpop.permute.xlu0 %1321
      %1323 = vrot.lane.b32.xlu0 %v1312, 127
      %v1324 = vpop.permute.xlu0 %1323
      %1325 = vrot.lane.b32.xlu0 %v1314, 127
      %v1326 = vpop.permute.xlu0 %1325
      %1327 = vrot.lane.b32.xlu0 %v1316, 127
      %v1328 = vpop.permute.xlu0 %1327
      %v1335 = vadd.f32 %v1123, %v1318
      %v1336 = vadd.f32 %v1124, %v1320
      %v1337 = vadd.f32 %v1125, %v1322
      %v1338 = vadd.f32 %v1126, %v1324
      %v1339 = vadd.f32 %v1127, %v1326
      %v1340 = vadd.f32 %v1128, %v1328
      %v1341 = vstv %s90
      %v1342 = vmul.f32 %v832, %v1341
      %v1343 = vmul.f32 %v833, %v1341
      %v1344 = vmul.f32 %v834, %v1341
      %v1345 = vmul.f32 %v835, %v1341
      %v1346 = vmul.f32 %v836, %v1341
      %v1347 = vmul.f32 %v837, %v1341
      %v1348 = vmul.f32 %v838, %v1341
      %v1356 = vrot.slane %v1342, 1
      %v1357 = vrot.slane %v1343, 1
      %v1358 = vsel %vm384, %v1356, %v1357
      %v1359 = vrot.slane %v1344, 1
      %v1360 = vsel %vm384, %v1357, %v1359
      %v1361 = vrot.slane %v1345, 1
      %v1362 = vsel %vm384, %v1359, %v1361
      %v1363 = vrot.slane %v1346, 1
      %v1364 = vsel %vm384, %v1361, %v1363
      %v1365 = vrot.slane %v1347, 1
      %v1366 = vsel %vm384, %v1363, %v1365
      %v1367 = vrot.slane %v1348, 1
      %v1368 = vsel %vm384, %v1365, %v1367
      %1369 = vrot.lane.b32.xlu0 %v1358, 127
      %v1370 = vpop.permute.xlu0 %1369
      %1371 = vrot.lane.b32.xlu0 %v1360, 127
      %v1372 = vpop.permute.xlu0 %1371
      %1373 = vrot.lane.b32.xlu0 %v1362, 127
      %v1374 = vpop.permute.xlu0 %1373
      %1375 = vrot.lane.b32.xlu0 %v1364, 127
      %v1376 = vpop.permute.xlu0 %1375
      %1377 = vrot.lane.b32.xlu0 %v1366, 127
      %v1378 = vpop.permute.xlu0 %1377
      %1379 = vrot.lane.b32.xlu0 %v1368, 127
      %v1380 = vpop.permute.xlu0 %1379
      %v1387 = vadd.f32 %v1163, %v1370
      %v1388 = vadd.f32 %v1164, %v1372
      %v1389 = vadd.f32 %v1165, %v1374
      %v1390 = vadd.f32 %v1166, %v1376
      %v1391 = vadd.f32 %v1167, %v1378
      %v1392 = vadd.f32 %v1168, %v1380
      %v1393 = vstv %s91
      %v1394 = vmul.f32 %v832, %v1393
      %v1395 = vmul.f32 %v833, %v1393
      %v1396 = vmul.f32 %v834, %v1393
      %v1397 = vmul.f32 %v835, %v1393
      %v1398 = vmul.f32 %v836, %v1393
      %v1399 = vmul.f32 %v837, %v1393
      %v1400 = vmul.f32 %v838, %v1393
      %v1408 = vrot.slane %v1394, 1
      %v1409 = vrot.slane %v1395, 1
      %v1410 = vsel %vm384, %v1408, %v1409
      %v1411 = vrot.slane %v1396, 1
      %v1412 = vsel %vm384, %v1409, %v1411
      %v1413 = vrot.slane %v1397, 1
      %v1414 = vsel %vm384, %v1411, %v1413
      %v1415 = vrot.slane %v1398, 1
      %v1416 = vsel %vm384, %v1413, %v1415
      %v1417 = vrot.slane %v1399, 1
      %v1418 = vsel %vm384, %v1415, %v1417
      %v1419 = vrot.slane %v1400, 1
      %v1420 = vsel %vm384, %v1417, %v1419
      %1421 = vrot.lane.b32.xlu0 %v1410, 127
      %v1422 = vpop.permute.xlu0 %1421
      %1423 = vrot.lane.b32.xlu0 %v1412, 127
      %v1424 = vpop.permute.xlu0 %1423
      %1425 = vrot.lane.b32.xlu0 %v1414, 127
      %v1426 = vpop.permute.xlu0 %1425
      %1427 = vrot.lane.b32.xlu0 %v1416, 127
      %v1428 = vpop.permute.xlu0 %1427
      %1429 = vrot.lane.b32.xlu0 %v1418, 127
      %v1430 = vpop.permute.xlu0 %1429
      %1431 = vrot.lane.b32.xlu0 %v1420, 127
      %v1432 = vpop.permute.xlu0 %1431
      %v1439 = vadd.f32 %v1203, %v1422
      %v1440 = vadd.f32 %v1204, %v1424
      %v1441 = vadd.f32 %v1205, %v1426
      %v1442 = vadd.f32 %v1206, %v1428
      %v1443 = vadd.f32 %v1207, %v1430
      %v1444 = vadd.f32 %v1208, %v1432
      %v1445 = vstv %s92
      %v1446 = vmul.f32 %v832, %v1445
      %v1447 = vmul.f32 %v833, %v1445
      %v1448 = vmul.f32 %v834, %v1445
      %v1449 = vmul.f32 %v835, %v1445
      %v1450 = vmul.f32 %v836, %v1445
      %v1451 = vmul.f32 %v837, %v1445
      %v1452 = vmul.f32 %v838, %v1445
      %v1460 = vrot.slane %v1446, 1
      %v1461 = vrot.slane %v1447, 1
      %v1462 = vsel %vm384, %v1460, %v1461
      %v1463 = vrot.slane %v1448, 1
      %v1464 = vsel %vm384, %v1461, %v1463
      %v1465 = vrot.slane %v1449, 1
      %v1466 = vsel %vm384, %v1463, %v1465
      %v1467 = vrot.slane %v1450, 1
      %v1468 = vsel %vm384, %v1465, %v1467
      %v1469 = vrot.slane %v1451, 1
      %v1470 = vsel %vm384, %v1467, %v1469
      %v1471 = vrot.slane %v1452, 1
      %v1472 = vsel %vm384, %v1469, %v1471
      %1473 = vrot.lane.b32.xlu0 %v1462, 127
      %v1474 = vpop.permute.xlu0 %1473
      %1475 = vrot.lane.b32.xlu0 %v1464, 127
      %v1476 = vpop.permute.xlu0 %1475
      %1477 = vrot.lane.b32.xlu0 %v1466, 127
      %v1478 = vpop.permute.xlu0 %1477
      %1479 = vrot.lane.b32.xlu0 %v1468, 127
      %v1480 = vpop.permute.xlu0 %1479
      %1481 = vrot.lane.b32.xlu0 %v1470, 127
      %v1482 = vpop.permute.xlu0 %1481
      %1483 = vrot.lane.b32.xlu0 %v1472, 127
      %v1484 = vpop.permute.xlu0 %1483
      %v1491 = vadd.f32 %v1243, %v1474
      %v1492 = vadd.f32 %v1244, %v1476
      %v1493 = vadd.f32 %v1245, %v1478
      %v1494 = vadd.f32 %v1246, %v1480
      %v1495 = vadd.f32 %v1247, %v1482
      %v1496 = vadd.f32 %v1248, %v1484
      %v1497 = vstv %s93
      %v1498 = vmul.f32 %v832, %v1497
      %v1499 = vmul.f32 %v833, %v1497
      %v1500 = vmul.f32 %v834, %v1497
      %v1501 = vmul.f32 %v835, %v1497
      %v1502 = vmul.f32 %v836, %v1497
      %v1503 = vmul.f32 %v837, %v1497
      %v1504 = vmul.f32 %v838, %v1497
      %v1512 = vrot.slane %v1498, 1
      %v1513 = vrot.slane %v1499, 1
      %v1514 = vsel %vm384, %v1512, %v1513
      %v1515 = vrot.slane %v1500, 1
      %v1516 = vsel %vm384, %v1513, %v1515
      %v1517 = vrot.slane %v1501, 1
      %v1518 = vsel %vm384, %v1515, %v1517
      %v1519 = vrot.slane %v1502, 1
      %v1520 = vsel %vm384, %v1517, %v1519
      %v1521 = vrot.slane %v1503, 1
      %v1522 = vsel %vm384, %v1519, %v1521
      %v1523 = vrot.slane %v1504, 1
      %v1524 = vsel %vm384, %v1521, %v1523
      %1525 = vrot.lane.b32.xlu0 %v1514, 127
      %v1526 = vpop.permute.xlu0 %1525
      %1527 = vrot.lane.b32.xlu0 %v1516, 127
      %v1528 = vpop.permute.xlu0 %1527
      %1529 = vrot.lane.b32.xlu0 %v1518, 127
      %v1530 = vpop.permute.xlu0 %1529
      %1531 = vrot.lane.b32.xlu0 %v1520, 127
      %v1532 = vpop.permute.xlu0 %1531
      %1533 = vrot.lane.b32.xlu0 %v1522, 127
      %v1534 = vpop.permute.xlu0 %1533
      %1535 = vrot.lane.b32.xlu0 %v1524, 127
      %v1536 = vpop.permute.xlu0 %1535
      %v1543 = vadd.f32 %v1283, %v1526
      %v1544 = vadd.f32 %v1284, %v1528
      %v1545 = vadd.f32 %v1285, %v1530
      %v1546 = vadd.f32 %v1286, %v1532
      %v1547 = vadd.f32 %v1287, %v1534
      %v1548 = vadd.f32 %v1288, %v1536
      %s1549 = sadd.s32 112, %s110
      %s1550 = scalar_lea.vmem %s0, %s1549
      %v1551 = vld [vmem:[%s1550] sm:$0xff]
      %v1552 = vld [vmem:[%s1550 + $0x8] sm:$0xff]
      %v1553 = vld [vmem:[%s1550 + $0x10] sm:$0xff]
      %v1554 = vld [vmem:[%s1550 + $0x18] sm:$0xff]
      %v1555 = vld [vmem:[%s1550 + $0x20] sm:$0xff]
      %v1556 = vld [vmem:[%s1550 + $0x28] sm:$0xff]
      %v1557 = vld [vmem:[%s1550 + $0x30] sm:$0x1]
      %v1558 = vstv %s49
      %v1559 = vmul.f32 %v1551, %v1558
      %v1560 = vmul.f32 %v1552, %v1558
      %v1561 = vmul.f32 %v1553, %v1558
      %v1562 = vmul.f32 %v1554, %v1558
      %v1563 = vmul.f32 %v1555, %v1558
      %v1564 = vmul.f32 %v1556, %v1558
      %v1565 = vadd.f32 %v1335, %v1559
      %v1566 = vadd.f32 %v1336, %v1560
      %v1567 = vadd.f32 %v1337, %v1561
      %v1568 = vadd.f32 %v1338, %v1562
      %v1569 = vadd.f32 %v1339, %v1563
      %v1570 = vadd.f32 %v1340, %v1564
      %v1571 = vstv %s50
      %v1572 = vmul.f32 %v1551, %v1571
      %v1573 = vmul.f32 %v1552, %v1571
      %v1574 = vmul.f32 %v1553, %v1571
      %v1575 = vmul.f32 %v1554, %v1571
      %v1576 = vmul.f32 %v1555, %v1571
      %v1577 = vmul.f32 %v1556, %v1571
      %v1578 = vadd.f32 %v1387, %v1572
      %v1579 = vadd.f32 %v1388, %v1573
      %v1580 = vadd.f32 %v1389, %v1574
      %v1581 = vadd.f32 %v1390, %v1575
      %v1582 = vadd.f32 %v1391, %v1576
      %v1583 = vadd.f32 %v1392, %v1577
      %v1584 = vstv %s51
      %v1585 = vmul.f32 %v1551, %v1584
      %v1586 = vmul.f32 %v1552, %v1584
      %v1587 = vmul.f32 %v1553, %v1584
      %v1588 = vmul.f32 %v1554, %v1584
      %v1589 = vmul.f32 %v1555, %v1584
      %v1590 = vmul.f32 %v1556, %v1584
      %v1591 = vadd.f32 %v1439, %v1585
      %v1592 = vadd.f32 %v1440, %v1586
      %v1593 = vadd.f32 %v1441, %v1587
      %v1594 = vadd.f32 %v1442, %v1588
      %v1595 = vadd.f32 %v1443, %v1589
      %v1596 = vadd.f32 %v1444, %v1590
      %v1597 = vstv %s52
      %v1598 = vmul.f32 %v1551, %v1597
      %v1599 = vmul.f32 %v1552, %v1597
      %v1600 = vmul.f32 %v1553, %v1597
      %v1601 = vmul.f32 %v1554, %v1597
      %v1602 = vmul.f32 %v1555, %v1597
      %v1603 = vmul.f32 %v1556, %v1597
      %v1604 = vadd.f32 %v1491, %v1598
      %v1605 = vadd.f32 %v1492, %v1599
      %v1606 = vadd.f32 %v1493, %v1600
      %v1607 = vadd.f32 %v1494, %v1601
      %v1608 = vadd.f32 %v1495, %v1602
      %v1609 = vadd.f32 %v1496, %v1603
      %v1610 = vstv %s53
      %v1611 = vmul.f32 %v1551, %v1610
      %v1612 = vmul.f32 %v1552, %v1610
      %v1613 = vmul.f32 %v1553, %v1610
      %v1614 = vmul.f32 %v1554, %v1610
      %v1615 = vmul.f32 %v1555, %v1610
      %v1616 = vmul.f32 %v1556, %v1610
      %v1617 = vadd.f32 %v1543, %v1611
      %v1618 = vadd.f32 %v1544, %v1612
      %v1619 = vadd.f32 %v1545, %v1613
      %v1620 = vadd.f32 %v1546, %v1614
      %v1621 = vadd.f32 %v1547, %v1615
      %v1622 = vadd.f32 %v1548, %v1616
      %v1623 = vstv %s64
      %v1624 = vmul.f32 %v1551, %v1623
      %v1625 = vmul.f32 %v1552, %v1623
      %v1626 = vmul.f32 %v1553, %v1623
      %v1627 = vmul.f32 %v1554, %v1623
      %v1628 = vmul.f32 %v1555, %v1623
      %v1629 = vmul.f32 %v1556, %v1623
      %1636 = vrot.lane.b32.xlu0 %v1624, 127
      %v1637 = vpop.permute.xlu0 %1636
      %1638 = vrot.lane.b32.xlu0 %v1625, 127
      %v1639 = vpop.permute.xlu0 %1638
      %1640 = vrot.lane.b32.xlu0 %v1626, 127
      %v1641 = vpop.permute.xlu0 %1640
      %1642 = vrot.lane.b32.xlu0 %v1627, 127
      %v1643 = vpop.permute.xlu0 %1642
      %1644 = vrot.lane.b32.xlu0 %v1628, 127
      %v1645 = vpop.permute.xlu0 %1644
      %1646 = vrot.lane.b32.xlu0 %v1629, 127
      %v1647 = vpop.permute.xlu0 %1646
      %v1654 = vadd.f32 %v1565, %v1637
      %v1655 = vadd.f32 %v1566, %v1639
      %v1656 = vadd.f32 %v1567, %v1641
      %v1657 = vadd.f32 %v1568, %v1643
      %v1658 = vadd.f32 %v1569, %v1645
      %v1659 = vadd.f32 %v1570, %v1647
      %v1660 = vstv %s65
      %v1661 = vmul.f32 %v1551, %v1660
      %v1662 = vmul.f32 %v1552, %v1660
      %v1663 = vmul.f32 %v1553, %v1660
      %v1664 = vmul.f32 %v1554, %v1660
      %v1665 = vmul.f32 %v1555, %v1660
      %v1666 = vmul.f32 %v1556, %v1660
      %1673 = vrot.lane.b32.xlu0 %v1661, 127
      %v1674 = vpop.permute.xlu0 %1673
      %1675 = vrot.lane.b32.xlu0 %v1662, 127
      %v1676 = vpop.permute.xlu0 %1675
      %1677 = vrot.lane.b32.xlu0 %v1663, 127
      %v1678 = vpop.permute.xlu0 %1677
      %1679 = vrot.lane.b32.xlu0 %v1664, 127
      %v1680 = vpop.permute.xlu0 %1679
      %1681 = vrot.lane.b32.xlu0 %v1665, 127
      %v1682 = vpop.permute.xlu0 %1681
      %1683 = vrot.lane.b32.xlu0 %v1666, 127
      %v1684 = vpop.permute.xlu0 %1683
      %v1691 = vadd.f32 %v1578, %v1674
      %v1692 = vadd.f32 %v1579, %v1676
      %v1693 = vadd.f32 %v1580, %v1678
      %v1694 = vadd.f32 %v1581, %v1680
      %v1695 = vadd.f32 %v1582, %v1682
      %v1696 = vadd.f32 %v1583, %v1684
      %v1697 = vstv %s66
      %v1698 = vmul.f32 %v1551, %v1697
      %v1699 = vmul.f32 %v1552, %v1697
      %v1700 = vmul.f32 %v1553, %v1697
      %v1701 = vmul.f32 %v1554, %v1697
      %v1702 = vmul.f32 %v1555, %v1697
      %v1703 = vmul.f32 %v1556, %v1697
      %1710 = vrot.lane.b32.xlu0 %v1698, 127
      %v1711 = vpop.permute.xlu0 %1710
      %1712 = vrot.lane.b32.xlu0 %v1699, 127
      %v1713 = vpop.permute.xlu0 %1712
      %1714 = vrot.lane.b32.xlu0 %v1700, 127
      %v1715 = vpop.permute.xlu0 %1714
      %1716 = vrot.lane.b32.xlu0 %v1701, 127
      %v1717 = vpop.permute.xlu0 %1716
      %1718 = vrot.lane.b32.xlu0 %v1702, 127
      %v1719 = vpop.permute.xlu0 %1718
      %1720 = vrot.lane.b32.xlu0 %v1703, 127
      %v1721 = vpop.permute.xlu0 %1720
      %v1728 = vadd.f32 %v1591, %v1711
      %v1729 = vadd.f32 %v1592, %v1713
      %v1730 = vadd.f32 %v1593, %v1715
      %v1731 = vadd.f32 %v1594, %v1717
      %v1732 = vadd.f32 %v1595, %v1719
      %v1733 = vadd.f32 %v1596, %v1721
      %v1734 = vstv %s67
      %v1735 = vmul.f32 %v1551, %v1734
      %v1736 = vmul.f32 %v1552, %v1734
      %v1737 = vmul.f32 %v1553, %v1734
      %v1738 = vmul.f32 %v1554, %v1734
      %v1739 = vmul.f32 %v1555, %v1734
      %v1740 = vmul.f32 %v1556, %v1734
      %1747 = vrot.lane.b32.xlu0 %v1735, 127
      %v1748 = vpop.permute.xlu0 %1747
      %1749 = vrot.lane.b32.xlu0 %v1736, 127
      %v1750 = vpop.permute.xlu0 %1749
      %1751 = vrot.lane.b32.xlu0 %v1737, 127
      %v1752 = vpop.permute.xlu0 %1751
      %1753 = vrot.lane.b32.xlu0 %v1738, 127
      %v1754 = vpop.permute.xlu0 %1753
      %1755 = vrot.lane.b32.xlu0 %v1739, 127
      %v1756 = vpop.permute.xlu0 %1755
      %1757 = vrot.lane.b32.xlu0 %v1740, 127
      %v1758 = vpop.permute.xlu0 %1757
      %v1765 = vadd.f32 %v1604, %v1748
      %v1766 = vadd.f32 %v1605, %v1750
      %v1767 = vadd.f32 %v1606, %v1752
      %v1768 = vadd.f32 %v1607, %v1754
      %v1769 = vadd.f32 %v1608, %v1756
      %v1770 = vadd.f32 %v1609, %v1758
      %v1771 = vstv %s68
      %v1772 = vmul.f32 %v1551, %v1771
      %v1773 = vmul.f32 %v1552, %v1771
      %v1774 = vmul.f32 %v1553, %v1771
      %v1775 = vmul.f32 %v1554, %v1771
      %v1776 = vmul.f32 %v1555, %v1771
      %v1777 = vmul.f32 %v1556, %v1771
      %1784 = vrot.lane.b32.xlu0 %v1772, 127
      %v1785 = vpop.permute.xlu0 %1784
      %1786 = vrot.lane.b32.xlu0 %v1773, 127
      %v1787 = vpop.permute.xlu0 %1786
      %1788 = vrot.lane.b32.xlu0 %v1774, 127
      %v1789 = vpop.permute.xlu0 %1788
      %1790 = vrot.lane.b32.xlu0 %v1775, 127
      %v1791 = vpop.permute.xlu0 %1790
      %1792 = vrot.lane.b32.xlu0 %v1776, 127
      %v1793 = vpop.permute.xlu0 %1792
      %1794 = vrot.lane.b32.xlu0 %v1777, 127
      %v1795 = vpop.permute.xlu0 %1794
      %v1802 = vadd.f32 %v1617, %v1785
      %v1803 = vadd.f32 %v1618, %v1787
      %v1804 = vadd.f32 %v1619, %v1789
      %v1805 = vadd.f32 %v1620, %v1791
      %v1806 = vadd.f32 %v1621, %v1793
      %v1807 = vadd.f32 %v1622, %v1795
      %v1808 = vstv %s79
      %v1809 = vmul.f32 %v1551, %v1808
      %v1810 = vmul.f32 %v1552, %v1808
      %v1811 = vmul.f32 %v1553, %v1808
      %v1812 = vmul.f32 %v1554, %v1808
      %v1813 = vmul.f32 %v1555, %v1808
      %v1814 = vmul.f32 %v1556, %v1808
      %v1815 = vmul.f32 %v1557, %v1808
      %v1823 = vrot.slane %v1809, 1
      %v1824 = vrot.slane %v1810, 1
      %v1825 = vsel %vm384, %v1823, %v1824
      %v1826 = vrot.slane %v1811, 1
      %v1827 = vsel %vm384, %v1824, %v1826
      %v1828 = vrot.slane %v1812, 1
      %v1829 = vsel %vm384, %v1826, %v1828
      %v1830 = vrot.slane %v1813, 1
      %v1831 = vsel %vm384, %v1828, %v1830
      %v1832 = vrot.slane %v1814, 1
      %v1833 = vsel %vm384, %v1830, %v1832
      %v1834 = vrot.slane %v1815, 1
      %v1835 = vsel %vm384, %v1832, %v1834
      %v1842 = vadd.f32 %v1654, %v1825
      %v1843 = vadd.f32 %v1655, %v1827
      %v1844 = vadd.f32 %v1656, %v1829
      %v1845 = vadd.f32 %v1657, %v1831
      %v1846 = vadd.f32 %v1658, %v1833
      %v1847 = vadd.f32 %v1659, %v1835
      %v1848 = vstv %s80
      %v1849 = vmul.f32 %v1551, %v1848
      %v1850 = vmul.f32 %v1552, %v1848
      %v1851 = vmul.f32 %v1553, %v1848
      %v1852 = vmul.f32 %v1554, %v1848
      %v1853 = vmul.f32 %v1555, %v1848
      %v1854 = vmul.f32 %v1556, %v1848
      %v1855 = vmul.f32 %v1557, %v1848
      %v1863 = vrot.slane %v1849, 1
      %v1864 = vrot.slane %v1850, 1
      %v1865 = vsel %vm384, %v1863, %v1864
      %v1866 = vrot.slane %v1851, 1
      %v1867 = vsel %vm384, %v1864, %v1866
      %v1868 = vrot.slane %v1852, 1
      %v1869 = vsel %vm384, %v1866, %v1868
      %v1870 = vrot.slane %v1853, 1
      %v1871 = vsel %vm384, %v1868, %v1870
      %v1872 = vrot.slane %v1854, 1
      %v1873 = vsel %vm384, %v1870, %v1872
      %v1874 = vrot.slane %v1855, 1
      %v1875 = vsel %vm384, %v1872, %v1874
      %v1882 = vadd.f32 %v1691, %v1865
      %v1883 = vadd.f32 %v1692, %v1867
      %v1884 = vadd.f32 %v1693, %v1869
      %v1885 = vadd.f32 %v1694, %v1871
      %v1886 = vadd.f32 %v1695, %v1873
      %v1887 = vadd.f32 %v1696, %v1875
      %v1888 = vstv %s81
      %v1889 = vmul.f32 %v1551, %v1888
      %v1890 = vmul.f32 %v1552, %v1888
      %v1891 = vmul.f32 %v1553, %v1888
      %v1892 = vmul.f32 %v1554, %v1888
      %v1893 = vmul.f32 %v1555, %v1888
      %v1894 = vmul.f32 %v1556, %v1888
      %v1895 = vmul.f32 %v1557, %v1888
      %v1903 = vrot.slane %v1889, 1
      %v1904 = vrot.slane %v1890, 1
      %v1905 = vsel %vm384, %v1903, %v1904
      %v1906 = vrot.slane %v1891, 1
      %v1907 = vsel %vm384, %v1904, %v1906
      %v1908 = vrot.slane %v1892, 1
      %v1909 = vsel %vm384, %v1906, %v1908
      %v1910 = vrot.slane %v1893, 1
      %v1911 = vsel %vm384, %v1908, %v1910
      %v1912 = vrot.slane %v1894, 1
      %v1913 = vsel %vm384, %v1910, %v1912
      %v1914 = vrot.slane %v1895, 1
      %v1915 = vsel %vm384, %v1912, %v1914
      %v1922 = vadd.f32 %v1728, %v1905
      %v1923 = vadd.f32 %v1729, %v1907
      %v1924 = vadd.f32 %v1730, %v1909
      %v1925 = vadd.f32 %v1731, %v1911
      %v1926 = vadd.f32 %v1732, %v1913
      %v1927 = vadd.f32 %v1733, %v1915
      %v1928 = vstv %s82
      %v1929 = vmul.f32 %v1551, %v1928
      %v1930 = vmul.f32 %v1552, %v1928
      %v1931 = vmul.f32 %v1553, %v1928
      %v1932 = vmul.f32 %v1554, %v1928
      %v1933 = vmul.f32 %v1555, %v1928
      %v1934 = vmul.f32 %v1556, %v1928
      %v1935 = vmul.f32 %v1557, %v1928
      %v1943 = vrot.slane %v1929, 1
      %v1944 = vrot.slane %v1930, 1
      %v1945 = vsel %vm384, %v1943, %v1944
      %v1946 = vrot.slane %v1931, 1
      %v1947 = vsel %vm384, %v1944, %v1946
      %v1948 = vrot.slane %v1932, 1
      %v1949 = vsel %vm384, %v1946, %v1948
      %v1950 = vrot.slane %v1933, 1
      %v1951 = vsel %vm384, %v1948, %v1950
      %v1952 = vrot.slane %v1934, 1
      %v1953 = vsel %vm384, %v1950, %v1952
      %v1954 = vrot.slane %v1935, 1
      %v1955 = vsel %vm384, %v1952, %v1954
      %v1962 = vadd.f32 %v1765, %v1945
      %v1963 = vadd.f32 %v1766, %v1947
      %v1964 = vadd.f32 %v1767, %v1949
      %v1965 = vadd.f32 %v1768, %v1951
      %v1966 = vadd.f32 %v1769, %v1953
      %v1967 = vadd.f32 %v1770, %v1955
      %v1968 = vstv %s83
      %v1969 = vmul.f32 %v1551, %v1968
      %v1970 = vmul.f32 %v1552, %v1968
      %v1971 = vmul.f32 %v1553, %v1968
      %v1972 = vmul.f32 %v1554, %v1968
      %v1973 = vmul.f32 %v1555, %v1968
      %v1974 = vmul.f32 %v1556, %v1968
      %v1975 = vmul.f32 %v1557, %v1968
      %v1983 = vrot.slane %v1969, 1
      %v1984 = vrot.slane %v1970, 1
      %v1985 = vsel %vm384, %v1983, %v1984
      %v1986 = vrot.slane %v1971, 1
      %v1987 = vsel %vm384, %v1984, %v1986
      %v1988 = vrot.slane %v1972, 1
      %v1989 = vsel %vm384, %v1986, %v1988
      %v1990 = vrot.slane %v1973, 1
      %v1991 = vsel %vm384, %v1988, %v1990
      %v1992 = vrot.slane %v1974, 1
      %v1993 = vsel %vm384, %v1990, %v1992
      %v1994 = vrot.slane %v1975, 1
      %v1995 = vsel %vm384, %v1992, %v1994
      %v2002 = vadd.f32 %v1802, %v1985
      %v2003 = vadd.f32 %v1803, %v1987
      %v2004 = vadd.f32 %v1804, %v1989
      %v2005 = vadd.f32 %v1805, %v1991
      %v2006 = vadd.f32 %v1806, %v1993
      %v2007 = vadd.f32 %v1807, %v1995
      %v2008 = vstv %s94
      %v2009 = vmul.f32 %v1551, %v2008
      %v2010 = vmul.f32 %v1552, %v2008
      %v2011 = vmul.f32 %v1553, %v2008
      %v2012 = vmul.f32 %v1554, %v2008
      %v2013 = vmul.f32 %v1555, %v2008
      %v2014 = vmul.f32 %v1556, %v2008
      %v2015 = vmul.f32 %v1557, %v2008
      %v2023 = vrot.slane %v2009, 1
      %v2024 = vrot.slane %v2010, 1
      %v2025 = vsel %vm384, %v2023, %v2024
      %v2026 = vrot.slane %v2011, 1
      %v2027 = vsel %vm384, %v2024, %v2026
      %v2028 = vrot.slane %v2012, 1
      %v2029 = vsel %vm384, %v2026, %v2028
      %v2030 = vrot.slane %v2013, 1
      %v2031 = vsel %vm384, %v2028, %v2030
      %v2032 = vrot.slane %v2014, 1
      %v2033 = vsel %vm384, %v2030, %v2032
      %v2034 = vrot.slane %v2015, 1
      %v2035 = vsel %vm384, %v2032, %v2034
      %2036 = vrot.lane.b32.xlu0 %v2025, 127
      %v2037 = vpop.permute.xlu0 %2036
      %2038 = vrot.lane.b32.xlu0 %v2027, 127
      %v2039 = vpop.permute.xlu0 %2038
      %2040 = vrot.lane.b32.xlu0 %v2029, 127
      %v2041 = vpop.permute.xlu0 %2040
      %2042 = vrot.lane.b32.xlu0 %v2031, 127
      %v2043 = vpop.permute.xlu0 %2042
      %2044 = vrot.lane.b32.xlu0 %v2033, 127
      %v2045 = vpop.permute.xlu0 %2044
      %2046 = vrot.lane.b32.xlu0 %v2035, 127
      %v2047 = vpop.permute.xlu0 %2046
      %v2054 = vadd.f32 %v1842, %v2037
      %v2055 = vadd.f32 %v1843, %v2039
      %v2056 = vadd.f32 %v1844, %v2041
      %v2057 = vadd.f32 %v1845, %v2043
      %v2058 = vadd.f32 %v1846, %v2045
      %v2059 = vadd.f32 %v1847, %v2047
      %v2060 = vstv %s95
      %v2061 = vmul.f32 %v1551, %v2060
      %v2062 = vmul.f32 %v1552, %v2060
      %v2063 = vmul.f32 %v1553, %v2060
      %v2064 = vmul.f32 %v1554, %v2060
      %v2065 = vmul.f32 %v1555, %v2060
      %v2066 = vmul.f32 %v1556, %v2060
      %v2067 = vmul.f32 %v1557, %v2060
      %v2075 = vrot.slane %v2061, 1
      %v2076 = vrot.slane %v2062, 1
      %v2077 = vsel %vm384, %v2075, %v2076
      %v2078 = vrot.slane %v2063, 1
      %v2079 = vsel %vm384, %v2076, %v2078
      %v2080 = vrot.slane %v2064, 1
      %v2081 = vsel %vm384, %v2078, %v2080
      %v2082 = vrot.slane %v2065, 1
      %v2083 = vsel %vm384, %v2080, %v2082
      %v2084 = vrot.slane %v2066, 1
      %v2085 = vsel %vm384, %v2082, %v2084
      %v2086 = vrot.slane %v2067, 1
      %v2087 = vsel %vm384, %v2084, %v2086
      %2088 = vrot.lane.b32.xlu0 %v2077, 127
      %v2089 = vpop.permute.xlu0 %2088
      %2090 = vrot.lane.b32.xlu0 %v2079, 127
      %v2091 = vpop.permute.xlu0 %2090
      %2092 = vrot.lane.b32.xlu0 %v2081, 127
      %v2093 = vpop.permute.xlu0 %2092
      %2094 = vrot.lane.b32.xlu0 %v2083, 127
      %v2095 = vpop.permute.xlu0 %2094
      %2096 = vrot.lane.b32.xlu0 %v2085, 127
      %v2097 = vpop.permute.xlu0 %2096
      %2098 = vrot.lane.b32.xlu0 %v2087, 127
      %v2099 = vpop.permute.xlu0 %2098
      %v2106 = vadd.f32 %v1882, %v2089
      %v2107 = vadd.f32 %v1883, %v2091
      %v2108 = vadd.f32 %v1884, %v2093
      %v2109 = vadd.f32 %v1885, %v2095
      %v2110 = vadd.f32 %v1886, %v2097
      %v2111 = vadd.f32 %v1887, %v2099
      %v2112 = vstv %s96
      %v2113 = vmul.f32 %v1551, %v2112
      %v2114 = vmul.f32 %v1552, %v2112
      %v2115 = vmul.f32 %v1553, %v2112
      %v2116 = vmul.f32 %v1554, %v2112
      %v2117 = vmul.f32 %v1555, %v2112
      %v2118 = vmul.f32 %v1556, %v2112
      %v2119 = vmul.f32 %v1557, %v2112
      %v2127 = vrot.slane %v2113, 1
      %v2128 = vrot.slane %v2114, 1
      %v2129 = vsel %vm384, %v2127, %v2128
      %v2130 = vrot.slane %v2115, 1
      %v2131 = vsel %vm384, %v2128, %v2130
      %v2132 = vrot.slane %v2116, 1
      %v2133 = vsel %vm384, %v2130, %v2132
      %v2134 = vrot.slane %v2117, 1
      %v2135 = vsel %vm384, %v2132, %v2134
      %v2136 = vrot.slane %v2118, 1
      %v2137 = vsel %vm384, %v2134, %v2136
      %v2138 = vrot.slane %v2119, 1
      %v2139 = vsel %vm384, %v2136, %v2138
      %2140 = vrot.lane.b32.xlu0 %v2129, 127
      %v2141 = vpop.permute.xlu0 %2140
      %2142 = vrot.lane.b32.xlu0 %v2131, 127
      %v2143 = vpop.permute.xlu0 %2142
      %2144 = vrot.lane.b32.xlu0 %v2133, 127
      %v2145 = vpop.permute.xlu0 %2144
      %2146 = vrot.lane.b32.xlu0 %v2135, 127
      %v2147 = vpop.permute.xlu0 %2146
      %2148 = vrot.lane.b32.xlu0 %v2137, 127
      %v2149 = vpop.permute.xlu0 %2148
      %2150 = vrot.lane.b32.xlu0 %v2139, 127
      %v2151 = vpop.permute.xlu0 %2150
      %v2158 = vadd.f32 %v1922, %v2141
      %v2159 = vadd.f32 %v1923, %v2143
      %v2160 = vadd.f32 %v1924, %v2145
      %v2161 = vadd.f32 %v1925, %v2147
      %v2162 = vadd.f32 %v1926, %v2149
      %v2163 = vadd.f32 %v1927, %v2151
      %v2164 = vstv %s97
      %v2165 = vmul.f32 %v1551, %v2164
      %v2166 = vmul.f32 %v1552, %v2164
      %v2167 = vmul.f32 %v1553, %v2164
      %v2168 = vmul.f32 %v1554, %v2164
      %v2169 = vmul.f32 %v1555, %v2164
      %v2170 = vmul.f32 %v1556, %v2164
      %v2171 = vmul.f32 %v1557, %v2164
      %v2179 = vrot.slane %v2165, 1
      %v2180 = vrot.slane %v2166, 1
      %v2181 = vsel %vm384, %v2179, %v2180
      %v2182 = vrot.slane %v2167, 1
      %v2183 = vsel %vm384, %v2180, %v2182
      %v2184 = vrot.slane %v2168, 1
      %v2185 = vsel %vm384, %v2182, %v2184
      %v2186 = vrot.slane %v2169, 1
      %v2187 = vsel %vm384, %v2184, %v2186
      %v2188 = vrot.slane %v2170, 1
      %v2189 = vsel %vm384, %v2186, %v2188
      %v2190 = vrot.slane %v2171, 1
      %v2191 = vsel %vm384, %v2188, %v2190
      %2192 = vrot.lane.b32.xlu0 %v2181, 127
      %v2193 = vpop.permute.xlu0 %2192
      %2194 = vrot.lane.b32.xlu0 %v2183, 127
      %v2195 = vpop.permute.xlu0 %2194
      %2196 = vrot.lane.b32.xlu0 %v2185, 127
      %v2197 = vpop.permute.xlu0 %2196
      %2198 = vrot.lane.b32.xlu0 %v2187, 127
      %v2199 = vpop.permute.xlu0 %2198
      %2200 = vrot.lane.b32.xlu0 %v2189, 127
      %v2201 = vpop.permute.xlu0 %2200
      %2202 = vrot.lane.b32.xlu0 %v2191, 127
      %v2203 = vpop.permute.xlu0 %2202
      %v2210 = vadd.f32 %v1962, %v2193
      %v2211 = vadd.f32 %v1963, %v2195
      %v2212 = vadd.f32 %v1964, %v2197
      %v2213 = vadd.f32 %v1965, %v2199
      %v2214 = vadd.f32 %v1966, %v2201
      %v2215 = vadd.f32 %v1967, %v2203
      %v2216 = vstv %s98
      %v2217 = vmul.f32 %v1551, %v2216
      %v2218 = vmul.f32 %v1552, %v2216
      %v2219 = vmul.f32 %v1553, %v2216
      %v2220 = vmul.f32 %v1554, %v2216
      %v2221 = vmul.f32 %v1555, %v2216
      %v2222 = vmul.f32 %v1556, %v2216
      %v2223 = vmul.f32 %v1557, %v2216
      %v2231 = vrot.slane %v2217, 1
      %v2232 = vrot.slane %v2218, 1
      %v2233 = vsel %vm384, %v2231, %v2232
      %v2234 = vrot.slane %v2219, 1
      %v2235 = vsel %vm384, %v2232, %v2234
      %v2236 = vrot.slane %v2220, 1
      %v2237 = vsel %vm384, %v2234, %v2236
      %v2238 = vrot.slane %v2221, 1
      %v2239 = vsel %vm384, %v2236, %v2238
      %v2240 = vrot.slane %v2222, 1
      %v2241 = vsel %vm384, %v2238, %v2240
      %v2242 = vrot.slane %v2223, 1
      %v2243 = vsel %vm384, %v2240, %v2242
      %2244 = vrot.lane.b32.xlu0 %v2233, 127
      %v2245 = vpop.permute.xlu0 %2244
      %2246 = vrot.lane.b32.xlu0 %v2235, 127
      %v2247 = vpop.permute.xlu0 %2246
      %2248 = vrot.lane.b32.xlu0 %v2237, 127
      %v2249 = vpop.permute.xlu0 %2248
      %2250 = vrot.lane.b32.xlu0 %v2239, 127
      %v2251 = vpop.permute.xlu0 %2250
      %2252 = vrot.lane.b32.xlu0 %v2241, 127
      %v2253 = vpop.permute.xlu0 %2252
      %2254 = vrot.lane.b32.xlu0 %v2243, 127
      %v2255 = vpop.permute.xlu0 %2254
      %v2262 = vadd.f32 %v2002, %v2245
      %v2263 = vadd.f32 %v2003, %v2247
      %v2264 = vadd.f32 %v2004, %v2249
      %v2265 = vadd.f32 %v2005, %v2251
      %v2266 = vadd.f32 %v2006, %v2253
      %v2267 = vadd.f32 %v2007, %v2255
      %v2268 = vstv %s99
      %v2269 = vadd.f32 %v2054, %v2268
      %v2270 = vadd.f32 %v2055, %v2268
      %v2271 = vadd.f32 %v2056, %v2268
      %v2272 = vadd.f32 %v2057, %v2268
      %v2273 = vadd.f32 %v2058, %v2268
      %v2274 = vadd.f32 %v2059, %v2268
      %v2275 = vtanh.pop %v2269
      %v2276 = vtanh.pop %v2270
      %v2277 = vtanh.pop %v2271
      %v2278 = vtanh.pop %v2272
      %v2279 = vtanh.pop %v2273
      %v2280 = vtanh.pop %v2274
      %s2281 = smul.u32 %s105, 240
      %s2282 = scalar_lea.vmem %s3, %s2281
      %vm2283 = vcmask 359424
      %2284 = vst.msk [vmem:[%s2282] sm:$0xff] %vm2283, %v2275
      %2285 = vst.msk [vmem:[%s2282 + $0x8] sm:$0xff] %vm2283, %v2276
      %2286 = vst.msk [vmem:[%s2282 + $0x10] sm:$0xff] %vm2283, %v2277
      %2287 = vst.msk [vmem:[%s2282 + $0x18] sm:$0xff] %vm2283, %v2278
      %2288 = vst.msk [vmem:[%s2282 + $0x20] sm:$0xff] %vm2283, %v2279
      %2289 = vst.msk [vmem:[%s2282 + $0x28] sm:$0xff] %vm2283, %v2280
      %v2290 = vstv %s100
      %v2291 = vadd.f32 %v2106, %v2290
      %v2292 = vadd.f32 %v2107, %v2290
      %v2293 = vadd.f32 %v2108, %v2290
      %v2294 = vadd.f32 %v2109, %v2290
      %v2295 = vadd.f32 %v2110, %v2290
      %v2296 = vadd.f32 %v2111, %v2290
      %v2297 = vtanh.pop %v2291
      %v2298 = vtanh.pop %v2292
      %v2299 = vtanh.pop %v2293
      %v2300 = vtanh.pop %v2294
      %v2301 = vtanh.pop %v2295
      %v2302 = vtanh.pop %v2296
      %s2303 = sadd.s32 48, %s2281
      %s2304 = scalar_lea.vmem %s3, %s2303
      %2305 = vst.msk [vmem:[%s2304] sm:$0xff] %vm2283, %v2297
      %2306 = vst.msk [vmem:[%s2304 + $0x8] sm:$0xff] %vm2283, %v2298
      %2307 = vst.msk [vmem:[%s2304 + $0x10] sm:$0xff] %vm2283, %v2299
      %2308 = vst.msk [vmem:[%s2304 + $0x18] sm:$0xff] %vm2283, %v2300
      %2309 = vst.msk [vmem:[%s2304 + $0x20] sm:$0xff] %vm2283, %v2301
      %2310 = vst.msk [vmem:[%s2304 + $0x28] sm:$0xff] %vm2283, %v2302
      %v2311 = vstv %s101
      %v2312 = vadd.f32 %v2158, %v2311
      %v2313 = vadd.f32 %v2159, %v2311
      %v2314 = vadd.f32 %v2160, %v2311
      %v2315 = vadd.f32 %v2161, %v2311
      %v2316 = vadd.f32 %v2162, %v2311
      %v2317 = vadd.f32 %v2163, %v2311
      %v2318 = vtanh.pop %v2312
      %v2319 = vtanh.pop %v2313
      %v2320 = vtanh.pop %v2314
      %v2321 = vtanh.pop %v2315
      %v2322 = vtanh.pop %v2316
      %v2323 = vtanh.pop %v2317
      %s2324 = sadd.s32 96, %s2281
      %s2325 = scalar_lea.vmem %s3, %s2324
      %2326 = vst.msk [vmem:[%s2325] sm:$0xff] %vm2283, %v2318
      %2327 = vst.msk [vmem:[%s2325 + $0x8] sm:$0xff] %vm2283, %v2319
      %2328 = vst.msk [vmem:[%s2325 + $0x10] sm:$0xff] %vm2283, %v2320
      %2329 = vst.msk [vmem:[%s2325 + $0x18] sm:$0xff] %vm2283, %v2321
      %2330 = vst.msk [vmem:[%s2325 + $0x20] sm:$0xff] %vm2283, %v2322
      %2331 = vst.msk [vmem:[%s2325 + $0x28] sm:$0xff] %vm2283, %v2323
      %v2332 = vstv %s102
      %v2333 = vadd.f32 %v2210, %v2332
      %v2334 = vadd.f32 %v2211, %v2332
      %v2335 = vadd.f32 %v2212, %v2332
      %v2336 = vadd.f32 %v2213, %v2332
      %v2337 = vadd.f32 %v2214, %v2332
      %v2338 = vadd.f32 %v2215, %v2332
      %v2339 = vtanh.pop %v2333
      %v2340 = vtanh.pop %v2334
      %v2341 = vtanh.pop %v2335
      %v2342 = vtanh.pop %v2336
      %v2343 = vtanh.pop %v2337
      %v2344 = vtanh.pop %v2338
      %s2345 = sadd.s32 144, %s2281
      %s2346 = scalar_lea.vmem %s3, %s2345
      %2347 = vst.msk [vmem:[%s2346] sm:$0xff] %vm2283, %v2339
      %2348 = vst.msk [vmem:[%s2346 + $0x8] sm:$0xff] %vm2283, %v2340
      %2349 = vst.msk [vmem:[%s2346 + $0x10] sm:$0xff] %vm2283, %v2341
      %2350 = vst.msk [vmem:[%s2346 + $0x18] sm:$0xff] %vm2283, %v2342
      %2351 = vst.msk [vmem:[%s2346 + $0x20] sm:$0xff] %vm2283, %v2343
      %2352 = vst.msk [vmem:[%s2346 + $0x28] sm:$0xff] %vm2283, %v2344
      %v2353 = vstv %s103
      %v2354 = vadd.f32 %v2262, %v2353
      %v2355 = vadd.f32 %v2263, %v2353
      %v2356 = vadd.f32 %v2264, %v2353
      %v2357 = vadd.f32 %v2265, %v2353
      %v2358 = vadd.f32 %v2266, %v2353
      %v2359 = vadd.f32 %v2267, %v2353
      %v2360 = vtanh.pop %v2354
      %v2361 = vtanh.pop %v2355
      %v2362 = vtanh.pop %v2356
      %v2363 = vtanh.pop %v2357
      %v2364 = vtanh.pop %v2358
      %v2365 = vtanh.pop %v2359
      %s2366 = sadd.s32 192, %s2281
      %s2367 = scalar_lea.vmem %s3, %s2366
      %2368 = vst.msk [vmem:[%s2367] sm:$0xff] %vm2283, %v2360
      %2369 = vst.msk [vmem:[%s2367 + $0x8] sm:$0xff] %vm2283, %v2361
      %2370 = vst.msk [vmem:[%s2367 + $0x10] sm:$0xff] %vm2283, %v2362
      %2371 = vst.msk [vmem:[%s2367 + $0x18] sm:$0xff] %vm2283, %v2363
      %2372 = vst.msk [vmem:[%s2367 + $0x20] sm:$0xff] %vm2283, %v2364
      %2373 = vst.msk [vmem:[%s2367 + $0x28] sm:$0xff] %vm2283, %v2365
    $region26: #{tpu_custom_call.1} parent=1 // loop_footer
      %s109 = sadd.s32 1, %s105
    $region27: #{tpu_custom_call.1} parent=1 // loop_footer_branch
      %104 = sbr.rel target = $region23
    $region28: #{tpu_custom_call.1} parent=1 // loop_exit
      _
    // Predicated region
    $region29: #{tpu_custom_call.1} parent=1 // pred_check
      _
    $region30: #{tpu_custom_call.1} parent=1 // pred_check_branch
      %2375 = sbr.rel (0) target = $region32
    $region31: #{tpu_custom_call.1} parent=1 // pred_region
      _
    $region32: #{tpu_custom_call.1} parent=1 // pred_fallthru
      _
    // Predicated region
    $region33: #{tpu_custom_call.1} parent=1 // pred_check
      _
    $region34: #{tpu_custom_call.1} parent=1 // pred_check_branch
      %2377 = sbr.rel (0) target = $region36
    $region35: #{tpu_custom_call.1} parent=1 // pred_region
      _
    $region36: #{tpu_custom_call.1} parent=1 // pred_fallthru
      _
    %2378 = vsyncpa [#allocation3], 1
    %2379 = vsyncpa [#allocation5], 1

</llo_original>
